<compile_context>
chip_gen: v6e
topology: v6e:2x2x1
jax: 0.10.0
libtpu: 0.0.40
codegen_flags: <defaults>
</compile_context>

<pallas_src>
import jax
import jax.numpy as jnp
from jax.experimental import pallas as pl
from jax.experimental.pallas import tpu as pltpu

EPS = 1e-6


def _round_up(x, m):
    return ((x + m - 1) // m) * m


# ---------------------------------------------------------------------------
# Pallas kernels
# ---------------------------------------------------------------------------
def _node_proj_kernel(x_ref, w_ref, o_ref):
    # x: (tn, d_i), w: (d_i, 2*(d_o+1)), o: (tn, 2*(d_o+1))
    o_ref[...] = jnp.dot(x_ref[...], w_ref[...], preferred_element_type=jnp.float32)


def _gat_agg_kernel(usrc_ref, vtgt_ref, bias_ref, mtgt_ref, o_ref, acc_ref):
    """Edge softmax + fused Mtgt aggregation.

    usrc_ref : (te, d_o+1)  node projection gathered at src
    vtgt_ref : (te, d_o+1)  node projection gathered at tgt
    bias_ref : (1,  d_o+1)  [bf | bw - a_base]   (softmax stabilizer folded in)
    mtgt_ref : (tn, te)     bf16 0/1 incidence block
    o_ref    : (tn, d_o)
    acc_ref  : (tn, d_o+1)  f32 accumulator ([numerator | denominator])
    """
    j = pl.program_id(1)

    @pl.when(j == 0)
    def _():
        acc_ref[...] = jnp.zeros_like(acc_ref)

    he = usrc_ref[...] + vtgt_ref[...] + bias_ref[...]        # (te, d_o+1)
    d_o = he.shape[1] - 1
    a_exp = jnp.exp(he[:, d_o:])                              # (te, 1)
    y = jnp.maximum(he[:, :d_o], 0.0)                         # relu(f(h))
    z = jnp.concatenate([y * a_exp, a_exp], axis=1)           # (te, d_o+1)

    mtgt = mtgt_ref[...].astype(jnp.float32)                  # bf16 -> f32 (exact for 0/1)
    acc_ref[...] += jnp.dot(mtgt, z, preferred_element_type=jnp.float32)

    @pl.when(j == pl.num_programs(1) - 1)
    def _():
        acc = acc_ref[...]
        o_ref[...] = acc[:, :d_o] / (acc[:, d_o:] + EPS)


def _readout_mlp_kernel(mg_ref, x_ref, w1_ref, b1_ref, w2_ref, b2_ref, o_ref):
    """Graph readout (Mgraph.T @ x, contraction on axis 0) + 2-layer MLP."""
    g = jax.lax.dot_general(
        mg_ref[...], x_ref[...],
        dimension_numbers=(((0,), (0,)), ((), ())),
        preferred_element_type=jnp.float32)                   # (G, 64)
    h1 = jnp.dot(g, w1_ref[...], preferred_element_type=jnp.float32) + b1_ref[...]
    h1 = jnp.maximum(h1, 0.0)
    o_ref[...] = (
        jnp.dot(h1, w2_ref[...], preferred_element_type=jnp.float32) + b2_ref[...]
    )


# ---------------------------------------------------------------------------
# pallas_call wrappers
# ---------------------------------------------------------------------------
_VMEM_SPEC = pl.BlockSpec(memory_space=pltpu.MemorySpace.VMEM)


def _node_proj(x_pad, w_node, tn):
    n_pad, d_i = x_pad.shape
    k = w_node.shape[1]
    return pl.pallas_call(
        _node_proj_kernel,
        out_shape=jax.ShapeDtypeStruct((n_pad, k), jnp.float32),
        grid_spec=pltpu.PrefetchScalarGridSpec(
            num_scalar_prefetch=0,
            grid=(n_pad // tn,),
            in_specs=[pl.BlockSpec((tn, d_i), lambda i: (i, 0)),
                      pl.BlockSpec((d_i, k), lambda i: (0, 0))],
            out_specs=pl.BlockSpec((tn, k), lambda i: (i, 0))),
        compiler_params=pltpu.CompilerParams(dimension_semantics=("parallel",)),
    )(x_pad, w_node)


def _gat_aggregate(u_src, v_tgt, bias_eff, mtgt_bf16, tn, te):
    e_pad, d_o1 = u_src.shape
    n_pad = mtgt_bf16.shape[0]
    d_o = d_o1 - 1
    return pl.pallas_call(
        _gat_agg_kernel,
        out_shape=jax.ShapeDtypeStruct((n_pad, d_o), jnp.float32),
        grid_spec=pltpu.PrefetchScalarGridSpec(
            num_scalar_prefetch=0,
            grid=(n_pad // tn, e_pad // te),
            in_specs=[
                pl.BlockSpec((te, d_o1), lambda i, j: (j, 0)),
                pl.BlockSpec((te, d_o1), lambda i, j: (j, 0)),
                pl.BlockSpec((1, d_o1), lambda i, j: (0, 0)),
                pl.BlockSpec((tn, te), lambda i, j: (i, j)),
            ],
            out_specs=pl.BlockSpec((tn, d_o), lambda i, j: (i, 0)),
            scratch_shapes=[pltpu.VMEM((tn, d_o1), jnp.float32)]),
        compiler_params=pltpu.CompilerParams(
            dimension_semantics=("parallel", "arbitrary")),
    )(u_src, v_tgt, bias_eff, mtgt_bf16)


def _readout_mlp(mgraph_pad, x_pad, w1_t, b1, w2_t, b2):
    g = mgraph_pad.shape[1]
    c = w2_t.shape[1]
    return pl.pallas_call(
        _readout_mlp_kernel,
        out_shape=jax.ShapeDtypeStruct((g, c), jnp.float32),
        in_specs=[_VMEM_SPEC] * 6,
        out_specs=_VMEM_SPEC,
    )(mgraph_pad, x_pad, w1_t, b1, w2_t, b2)


# ---------------------------------------------------------------------------
# One GAT layer (glue: data-dependent gather + global softmax max stay in JAX)
# ---------------------------------------------------------------------------
def _gat_layer(x_pad, w_node, bf, bw, src, tgt, mtgt_bf16, tn, te, num_edges):
    d_o1 = w_node.shape[1] // 2                       # d_o + 1  (static)
    e_pad = mtgt_bf16.shape[1]

    proj = _node_proj(x_pad, w_node, tn)              # (N_pad, 2*(d_o+1))
    u = proj[:, :d_o1]                                # src-half projection
    v = proj[:, d_o1:]                                # tgt-half projection

    # Data-dependent gather (no clean tiled Pallas equivalent) stays in JAX.
    u_src = jnp.take(u, src, axis=0)                  # (E, d_o+1)
    v_tgt = jnp.take(v, tgt, axis=0)                  # (E, d_o+1)

    # Global edge-softmax stabilizer, matches torch: max over ALL edges.
    a = u_src[:, d_o1 - 1] + v_tgt[:, d_o1 - 1] + bw[0, 0]
    a_base = jnp.max(a)
    bias_eff = jnp.concatenate([bf, bw - a_base], axis=1)   # (1, d_o+1)

    # Pad the edge dimension; padded edges are killed by zero Mtgt columns.
    pad_e = e_pad - num_edges
    u_src = jnp.pad(u_src, ((0, pad_e), (0, 0)))
    v_tgt = jnp.pad(v_tgt, ((0, pad_e), (0, 0)))

    return _gat_aggregate(u_src, v_tgt, bias_eff, mtgt_bf16, tn, te)


# ---------------------------------------------------------------------------
# Parameter construction (deterministic, xavier-uniform like torch init)
# ---------------------------------------------------------------------------
def _xavier_uniform(key, shape):
    fan_out, fan_in = shape                            # nn.Linear.weight layout
    bound = jnp.sqrt(6.0 / (fan_in + fan_out))
    return jax.random.uniform(key, shape, jnp.float32, -bound, bound)


def _linear_bias(key, fan_in, fan_out):
    bound = 1.0 / jnp.sqrt(fan_in)
    return jax.random.uniform(key, (1, fan_out), jnp.float32, -bound, bound)


def init_params(key, num_features, num_classes):
    gat_sizes = [num_features, 32, 64, 64]
    mlp_sizes = [gat_sizes[-1], 32, num_classes]
    params = {"gat": [], "mlp": []}
    for d_i, d_o in zip(gat_sizes[:-1], gat_sizes[1:]):
        key, kf, kbf, kw, kbw = jax.random.split(key, 5)
        wf = _xavier_uniform(kf, (d_o, 2 * d_i))       # f.weight
        bf = _linear_bias(kbf, 2 * d_i, d_o)           # f.bias  (1, d_o)
        ww = _xavier_uniform(kw, (1, 2 * d_i))         # w.weight
        bw = _linear_bias(kbw, 2 * d_i, 1)             # w.bias  (1, 1)
        wf_t = wf.T                                    # (2d_i, d_o)
        ww_t = ww.T                                    # (2d_i, 1)
        w_src = jnp.concatenate([wf_t[:d_i], ww_t[:d_i]], axis=1)   # (d_i, d_o+1)
        w_tgt = jnp.concatenate([wf_t[d_i:], ww_t[d_i:]], axis=1)   # (d_i, d_o+1)
        w_node = jnp.concatenate([w_src, w_tgt], axis=1)            # (d_i, 2*(d_o+1))
        params["gat"].append((w_node, bf, bw))
    for d_i, d_o in zip(mlp_sizes[:-1], mlp_sizes[1:]):
        key, kw, kb = jax.random.split(key, 3)
        w = _xavier_uniform(kw, (d_o, d_i))
        b = _linear_bias(kb, d_i, d_o)
        params["mlp"].append((w.T, b))
    return params


# ---------------------------------------------------------------------------
# Full forward
# ---------------------------------------------------------------------------
@jax.jit
def gat_mnist_forward(params, x, adj, src, tgt, Msrc, Mtgt, Mgraph):
    # adj and Msrc are accepted for interface fidelity but unused (as in torch).
    del adj, Msrc
    n = x.shape[0]
    e = src.shape[0]

    # Tile sizes (static): tn multiple of 16 (bf16 sublane pack), te multiple of 128.
    tn = min(256, _round_up(n, 16))
    n_pad = _round_up(n, tn)
    te = min(512, _round_up(e, 128))
    e_pad = _round_up(e, te)

    x_pad = jnp.pad(x, ((0, n_pad - n), (0, 0)))
    mtgt_bf16 = jnp.pad(Mtgt, ((0, n_pad - n), (0, e_pad - e))).astype(jnp.bfloat16)
    mgraph_pad = jnp.pad(Mgraph, ((0, n_pad - n), (0, 0)))

    for w_node, bf, bw in params["gat"]:
        x_pad = _gat_layer(x_pad, w_node, bf, bw, src, tgt, mtgt_bf16, tn, te, e)

    (w1_t, b1), (w2_t, b2) = params["mlp"]
    return _readout_mlp(mgraph_pad, x_pad, w1_t, b1, w2_t, b2)


# ---------------------------------------------------------------------------
# Example / smoke test
# ---------------------------------------------------------------------------
if __name__ == "__main__":
    num_features = 4
    num_classes = 10
    N, E, G = 8, 16, 2

    key = jax.random.PRNGKey(0)
    key, kx, ksrc, ktgt, kparam = jax.random.split(key, 5)

    x = jax.random.normal(kx, (N, num_features), jnp.float32)
    src = jax.random.randint(ksrc, (E,), 0, N, dtype=jnp.int32)
    # make sure every node is a target of at least one edge
    tgt = jnp.concatenate(
        [jnp.arange(N, dtype=jnp.int32),
         jax.random.randint(ktgt, (E - N,), 0, N, dtype=jnp.int32)]
    )

    adj = jnp.zeros((N, N), jnp.float32).at[src, tgt].set(1.0)
    Msrc = jnp.zeros((N, E), jnp.float32).at[src, jnp.arange(E)].set(1.0)
    Mtgt = jnp.zeros((N, E), jnp.float32).at[tgt, jnp.arange(E)].set(1.0)
    graph_of_node = jnp.concatenate(
        [jnp.zeros((N // 2,), jnp.int32), jnp.ones((N - N // 2,), jnp.int32)]
    )
    Mgraph = jnp.zeros((N, G), jnp.float32).at[jnp.arange(N), graph_of_node].set(1.0)

    params = init_params(kparam, num_features, num_classes)

    out = gat_mnist_forward(params, x, adj, src, tgt, Msrc, Mtgt, Mgraph)
    out = jax.block_until_ready(out)
    assert out.shape == (G, num_classes)
    assert not bool(jnp.isnan(out).any())
    print("KERNEL_OK")
</pallas_src>

<mosaic_0001>
module attributes {stable_mosaic.version = 11 : i64} {
  func.func @_node_proj_kernel(%arg0: i32, %arg1: memref<16x4xf32, #tpu.memory_space<vmem>>, %arg2: memref<4x66xf32, #tpu.memory_space<vmem>>, %arg3: memref<16x66xf32, #tpu.memory_space<vmem>>) attributes {dimension_semantics = [#tpu.dimension_semantics<parallel>], iteration_bounds = array<i64: 1>, scalar_prefetch = 0 : i64, scratch_operands = 0 : i64, tpu.core_type = #tpu.core_type<tc>, window_params = [{transform_indices = @transform_0, window_bounds = array<i64: 16, 4>}, {pipeline_mode = #tpu.pipeline_mode<synchronous>, transform_indices = @transform_1, window_bounds = array<i64: 4, 66>}, {transform_indices = @transform_2, window_bounds = array<i64: 16, 66>}]} {
    %c0 = arith.constant 0 : index
    %c0_0 = arith.constant 0 : index
    %0 = vector.load %arg1[%c0, %c0_0] : memref<16x4xf32, #tpu.memory_space<vmem>>, vector<16x4xf32>
    %c0_1 = arith.constant 0 : index
    %c0_2 = arith.constant 0 : index
    %1 = vector.load %arg2[%c0_1, %c0_2] : memref<4x66xf32, #tpu.memory_space<vmem>>, vector<4x66xf32>
    %cst = arith.constant dense<0.000000e+00> : vector<16x66xf32>
    %2 = tpu.matmul %0, %1, %cst {dimension_numbers = #tpu.dot_dimension_numbers<[1], [0], [0], [1], [0, 0, 1, 1], [], []>} : vector<16x4xf32>, vector<4x66xf32>, vector<16x66xf32> -> vector<16x66xf32>
    %c0_3 = arith.constant 0 : index
    %c0_4 = arith.constant 0 : index
    %3 = vector.load %arg3[%c0_3, %c0_4] : memref<16x66xf32, #tpu.memory_space<vmem>>, vector<16x66xf32>
    tpu.vector_store %arg3[%c0_3, %c0_4], %2 {strides = array<i32>} : memref<16x66xf32, #tpu.memory_space<vmem>>, vector<16x66xf32>,
    return
  }
  func.func @transform_0(%arg0: i32) -> (i32, i32) {
    %c0_i32 = arith.constant 0 : i32
    %c0_i32_0 = arith.constant 0 : i32
    return %arg0, %c0_i32 : i32, i32
  }
  func.func @transform_1(%arg0: i32) -> (i32, i32) {
    %c0_i32 = arith.constant 0 : i32
    %c0_i32_0 = arith.constant 0 : i32
    %c0_i32_1 = arith.constant 0 : i32
    return %c0_i32, %c0_i32_0 : i32, i32
  }
  func.func @transform_2(%arg0: i32) -> (i32, i32) {
    %c0_i32 = arith.constant 0 : i32
    %c0_i32_0 = arith.constant 0 : i32
    return %arg0, %c0_i32 : i32, i32
  }
}

module attributes {stable_mosaic.version = 11 : i64} {
  func.func @_gat_agg_kernel(%arg0: i32, %arg1: i32, %arg2: memref<128x33xf32, #tpu.memory_space<vmem>>, %arg3: memref<128x33xf32, #tpu.memory_space<vmem>>, %arg4: memref<1x33xf32, #tpu.memory_space<vmem>>, %arg5: memref<16x128xbf16, #tpu.memory_space<vmem>>, %arg6: memref<16x32xf32, #tpu.memory_space<vmem>>, %arg7: memref<16x33xf32, #tpu.memory_space<vmem>>) attributes {dimension_semantics = [#tpu.dimension_semantics<parallel>, #tpu.dimension_semantics<arbitrary>], iteration_bounds = array<i64: 1, 1>, scalar_prefetch = 0 : i64, scratch_operands = 1 : i64, tpu.core_type = #tpu.core_type<tc>, window_params = [{transform_indices = @transform_0, window_bounds = array<i64: 128, 33>}, {transform_indices = @transform_1, window_bounds = array<i64: 128, 33>}, {pipeline_mode = #tpu.pipeline_mode<synchronous>, transform_indices = @transform_2, window_bounds = array<i64: 1, 33>}, {transform_indices = @transform_3, window_bounds = array<i64: 16, 128>}, {transform_indices = @transform_4, window_bounds = array<i64: 16, 32>}]} {
    %c0_i32 = arith.constant 0 : i32
    %0 = arith.cmpi eq, %arg1, %c0_i32 : i32
    %1 = arith.extui %0 : i1 to i32
    %c0_i32_0 = arith.constant 0 : i32
    %2 = arith.cmpi ne, %1, %c0_i32_0 : i32
    scf.if %2 {
      %cst_15 = arith.constant 0.000000e+00 : f32
      %26 = vector.broadcast %cst_15 : f32 to vector<16x33xf32>
      %c0_16 = arith.constant 0 : index
      %c0_17 = arith.constant 0 : index
      %27 = vector.load %arg7[%c0_16, %c0_17] : memref<16x33xf32, #tpu.memory_space<vmem>>, vector<16x33xf32>
      tpu.vector_store %arg7[%c0_16, %c0_17], %26 {strides = array<i32>} : memref<16x33xf32, #tpu.memory_space<vmem>>, vector<16x33xf32>,
    } else {
    }
    %c0 = arith.constant 0 : index
    %c0_1 = arith.constant 0 : index
    %3 = vector.load %arg2[%c0, %c0_1] : memref<128x33xf32, #tpu.memory_space<vmem>>, vector<128x33xf32>
    %c0_2 = arith.constant 0 : index
    %c0_3 = arith.constant 0 : index
    %4 = vector.load %arg3[%c0_2, %c0_3] : memref<128x33xf32, #tpu.memory_space<vmem>>, vector<128x33xf32>
    %5 = arith.addf %3, %4 : vector<128x33xf32>
    %c0_4 = arith.constant 0 : index
    %c0_5 = arith.constant 0 : index
    %6 = vector.load %arg4[%c0_4, %c0_5] : memref<1x33xf32, #tpu.memory_space<vmem>>, vector<1x33xf32>
    %7 = vector.broadcast %6 : vector<1x33xf32> to vector<128x33xf32>
    %8 = arith.addf %5, %7 : vector<128x33xf32>
    %9 = vector.extract_strided_slice %8 {offsets = [0, 32], sizes = [128, 1], strides = [1, 1]} : vector<128x33xf32> to vector<128x1xf32>
    %10 = math.exp %9 : vector<128x1xf32>
    %11 = vector.extract_strided_slice %8 {offsets = [0, 0], sizes = [128, 32], strides = [1, 1]} : vector<128x33xf32> to vector<128x32xf32>
    %cst = arith.constant 0.000000e+00 : f32
    %12 = vector.broadcast %cst : f32 to vector<128x32xf32>
    %13 = arith.maximumf %11, %12 : vector<128x32xf32>
    %14 = vector.broadcast %10 : vector<128x1xf32> to vector<128x32xf32>
    %15 = arith.mulf %13, %14 : vector<128x32xf32>
    %16 = tpu.concatenate %15, %10 in 1 : vector<128x32xf32>, vector<128x1xf32> -> vector<128x33xf32>
    %c0_6 = arith.constant 0 : index
    %c0_7 = arith.constant 0 : index
    %17 = vector.load %arg5[%c0_6, %c0_7] : memref<16x128xbf16, #tpu.memory_space<vmem>>, vector<16x128xbf16>
    %18 = arith.extf %17 : vector<16x128xbf16> to vector<16x128xf32>
    %c0_8 = arith.constant 0 : index
    %c0_9 = arith.constant 0 : index
    %19 = vector.load %arg7[%c0_8, %c0_9] : memref<16x33xf32, #tpu.memory_space<vmem>>, vector<16x33xf32>
    %cst_10 = arith.constant dense<0.000000e+00> : vector<16x33xf32>
    %20 = tpu.matmul %18, %16, %cst_10 {dimension_numbers = #tpu.dot_dimension_numbers<[1], [0], [0], [1], [0, 0, 1, 1], [], []>} : vector<16x128xf32>, vector<128x33xf32>, vector<16x33xf32> -> vector<16x33xf32>
    %21 = arith.addf %19, %20 : vector<16x33xf32>
    %c0_11 = arith.constant 0 : index
    %c0_12 = arith.constant 0 : index
    %22 = vector.load %arg7[%c0_11, %c0_12] : memref<16x33xf32, #tpu.memory_space<vmem>>, vector<16x33xf32>
    tpu.vector_store %arg7[%c0_11, %c0_12], %21 {strides = array<i32>} : memref<16x33xf32, #tpu.memory_space<vmem>>, vector<16x33xf32>,
    %c0_i32_13 = arith.constant 0 : i32
    %23 = arith.cmpi eq, %arg1, %c0_i32_13 : i32
    %24 = arith.extui %23 : i1 to i32
    %c0_i32_14 = arith.constant 0 : i32
    %25 = arith.cmpi ne, %24, %c0_i32_14 : i32
    scf.if %25 {
      %c0_15 = arith.constant 0 : index
      %c0_16 = arith.constant 0 : index
      %26 = vector.load %arg7[%c0_15, %c0_16] : memref<16x33xf32, #tpu.memory_space<vmem>>, vector<16x33xf32>
      %27 = vector.extract_strided_slice %26 {offsets = [0, 0], sizes = [16, 32], strides = [1, 1]} : vector<16x33xf32> to vector<16x32xf32>
      %28 = vector.extract_strided_slice %26 {offsets = [0, 32], sizes = [16, 1], strides = [1, 1]} : vector<16x33xf32> to vector<16x1xf32>
      %cst_17 = arith.constant 9.99999997E-7 : f32
      %29 = vector.broadcast %cst_17 : f32 to vector<16x1xf32>
      %30 = arith.addf %28, %29 : vector<16x1xf32>
      %31 = vector.broadcast %30 : vector<16x1xf32> to vector<16x32xf32>
      %32 = arith.divf %27, %31 : vector<16x32xf32>
      %c0_18 = arith.constant 0 : index
      %c0_19 = arith.constant 0 : index
      %33 = vector.load %arg6[%c0_18, %c0_19] : memref<16x32xf32, #tpu.memory_space<vmem>>, vector<16x32xf32>
      tpu.vector_store %arg6[%c0_18, %c0_19], %32 {strides = array<i32>} : memref<16x32xf32, #tpu.memory_space<vmem>>, vector<16x32xf32>,
    } else {
    }
    return
  }
  func.func @transform_0(%arg0: i32, %arg1: i32) -> (i32, i32) {
    %c0_i32 = arith.constant 0 : i32
    %c0_i32_0 = arith.constant 0 : i32
    return %arg1, %c0_i32 : i32, i32
  }
  func.func @transform_1(%arg0: i32, %arg1: i32) -> (i32, i32) {
    %c0_i32 = arith.constant 0 : i32
    %c0_i32_0 = arith.constant 0 : i32
    return %arg1, %c0_i32 : i32, i32
  }
  func.func @transform_2(%arg0: i32, %arg1: i32) -> (i32, i32) {
    %c0_i32 = arith.constant 0 : i32
    %c0_i32_0 = arith.constant 0 : i32
    %c0_i32_1 = arith.constant 0 : i32
    return %c0_i32, %c0_i32_0 : i32, i32
  }
  func.func @transform_3(%arg0: i32, %arg1: i32) -> (i32, i32) {
    %c0_i32 = arith.constant 0 : i32
    return %arg0, %arg1 : i32, i32
  }
  func.func @transform_4(%arg0: i32, %arg1: i32) -> (i32, i32) {
    %c0_i32 = arith.constant 0 : i32
    %c0_i32_0 = arith.constant 0 : i32
    return %arg0, %c0_i32 : i32, i32
  }
}

module attributes {stable_mosaic.version = 11 : i64} {
  func.func @_node_proj_kernel(%arg0: i32, %arg1: memref<16x32xf32, #tpu.memory_space<vmem>>, %arg2: memref<32x130xf32, #tpu.memory_space<vmem>>, %arg3: memref<16x130xf32, #tpu.memory_space<vmem>>) attributes {dimension_semantics = [#tpu.dimension_semantics<parallel>], iteration_bounds = array<i64: 1>, scalar_prefetch = 0 : i64, scratch_operands = 0 : i64, tpu.core_type = #tpu.core_type<tc>, window_params = [{transform_indices = @transform_0, window_bounds = array<i64: 16, 32>}, {pipeline_mode = #tpu.pipeline_mode<synchronous>, transform_indices = @transform_1, window_bounds = array<i64: 32, 130>}, {transform_indices = @transform_2, window_bounds = array<i64: 16, 130>}]} {
    %c0 = arith.constant 0 : index
    %c0_0 = arith.constant 0 : index
    %0 = vector.load %arg1[%c0, %c0_0] : memref<16x32xf32, #tpu.memory_space<vmem>>, vector<16x32xf32>
    %c0_1 = arith.constant 0 : index
    %c0_2 = arith.constant 0 : index
    %1 = vector.load %arg2[%c0_1, %c0_2] : memref<32x130xf32, #tpu.memory_space<vmem>>, vector<32x130xf32>
    %cst = arith.constant dense<0.000000e+00> : vector<16x130xf32>
    %2 = tpu.matmul %0, %1, %cst {dimension_numbers = #tpu.dot_dimension_numbers<[1], [0], [0], [1], [0, 0, 1, 1], [], []>} : vector<16x32xf32>, vector<32x130xf32>, vector<16x130xf32> -> vector<16x130xf32>
    %c0_3 = arith.constant 0 : index
    %c0_4 = arith.constant 0 : index
    %3 = vector.load %arg3[%c0_3, %c0_4] : memref<16x130xf32, #tpu.memory_space<vmem>>, vector<16x130xf32>
    tpu.vector_store %arg3[%c0_3, %c0_4], %2 {strides = array<i32>} : memref<16x130xf32, #tpu.memory_space<vmem>>, vector<16x130xf32>,
    return
  }
  func.func @transform_0(%arg0: i32) -> (i32, i32) {
    %c0_i32 = arith.constant 0 : i32
    %c0_i32_0 = arith.constant 0 : i32
    return %arg0, %c0_i32 : i32, i32
  }
  func.func @transform_1(%arg0: i32) -> (i32, i32) {
    %c0_i32 = arith.constant 0 : i32
    %c0_i32_0 = arith.constant 0 : i32
    %c0_i32_1 = arith.constant 0 : i32
    return %c0_i32, %c0_i32_0 : i32, i32
  }
  func.func @transform_2(%arg0: i32) -> (i32, i32) {
    %c0_i32 = arith.constant 0 : i32
    %c0_i32_0 = arith.constant 0 : i32
    return %arg0, %c0_i32 : i32, i32
  }
}

module attributes {stable_mosaic.version = 11 : i64} {
  func.func @_gat_agg_kernel(%arg0: i32, %arg1: i32, %arg2: memref<128x65xf32, #tpu.memory_space<vmem>>, %arg3: memref<128x65xf32, #tpu.memory_space<vmem>>, %arg4: memref<1x65xf32, #tpu.memory_space<vmem>>, %arg5: memref<16x128xbf16, #tpu.memory_space<vmem>>, %arg6: memref<16x64xf32, #tpu.memory_space<vmem>>, %arg7: memref<16x65xf32, #tpu.memory_space<vmem>>) attributes {dimension_semantics = [#tpu.dimension_semantics<parallel>, #tpu.dimension_semantics<arbitrary>], iteration_bounds = array<i64: 1, 1>, scalar_prefetch = 0 : i64, scratch_operands = 1 : i64, tpu.core_type = #tpu.core_type<tc>, window_params = [{transform_indices = @transform_0, window_bounds = array<i64: 128, 65>}, {transform_indices = @transform_1, window_bounds = array<i64: 128, 65>}, {pipeline_mode = #tpu.pipeline_mode<synchronous>, transform_indices = @transform_2, window_bounds = array<i64: 1, 65>}, {transform_indices = @transform_3, window_bounds = array<i64: 16, 128>}, {transform_indices = @transform_4, window_bounds = array<i64: 16, 64>}]} {
    %c0_i32 = arith.constant 0 : i32
    %0 = arith.cmpi eq, %arg1, %c0_i32 : i32
    %1 = arith.extui %0 : i1 to i32
    %c0_i32_0 = arith.constant 0 : i32
    %2 = arith.cmpi ne, %1, %c0_i32_0 : i32
    scf.if %2 {
      %cst_15 = arith.constant 0.000000e+00 : f32
      %26 = vector.broadcast %cst_15 : f32 to vector<16x65xf32>
      %c0_16 = arith.constant 0 : index
      %c0_17 = arith.constant 0 : index
      %27 = vector.load %arg7[%c0_16, %c0_17] : memref<16x65xf32, #tpu.memory_space<vmem>>, vector<16x65xf32>
      tpu.vector_store %arg7[%c0_16, %c0_17], %26 {strides = array<i32>} : memref<16x65xf32, #tpu.memory_space<vmem>>, vector<16x65xf32>,
    } else {
    }
    %c0 = arith.constant 0 : index
    %c0_1 = arith.constant 0 : index
    %3 = vector.load %arg2[%c0, %c0_1] : memref<128x65xf32, #tpu.memory_space<vmem>>, vector<128x65xf32>
    %c0_2 = arith.constant 0 : index
    %c0_3 = arith.constant 0 : index
    %4 = vector.load %arg3[%c0_2, %c0_3] : memref<128x65xf32, #tpu.memory_space<vmem>>, vector<128x65xf32>
    %5 = arith.addf %3, %4 : vector<128x65xf32>
    %c0_4 = arith.constant 0 : index
    %c0_5 = arith.constant 0 : index
    %6 = vector.load %arg4[%c0_4, %c0_5] : memref<1x65xf32, #tpu.memory_space<vmem>>, vector<1x65xf32>
    %7 = vector.broadcast %6 : vector<1x65xf32> to vector<128x65xf32>
    %8 = arith.addf %5, %7 : vector<128x65xf32>
    %9 = vector.extract_strided_slice %8 {offsets = [0, 64], sizes = [128, 1], strides = [1, 1]} : vector<128x65xf32> to vector<128x1xf32>
    %10 = math.exp %9 : vector<128x1xf32>
    %11 = vector.extract_strided_slice %8 {offsets = [0, 0], sizes = [128, 64], strides = [1, 1]} : vector<128x65xf32> to vector<128x64xf32>
    %cst = arith.constant 0.000000e+00 : f32
    %12 = vector.broadcast %cst : f32 to vector<128x64xf32>
    %13 = arith.maximumf %11, %12 : vector<128x64xf32>
    %14 = vector.broadcast %10 : vector<128x1xf32> to vector<128x64xf32>
    %15 = arith.mulf %13, %14 : vector<128x64xf32>
    %16 = tpu.concatenate %15, %10 in 1 : vector<128x64xf32>, vector<128x1xf32> -> vector<128x65xf32>
    %c0_6 = arith.constant 0 : index
    %c0_7 = arith.constant 0 : index
    %17 = vector.load %arg5[%c0_6, %c0_7] : memref<16x128xbf16, #tpu.memory_space<vmem>>, vector<16x128xbf16>
    %18 = arith.extf %17 : vector<16x128xbf16> to vector<16x128xf32>
    %c0_8 = arith.constant 0 : index
    %c0_9 = arith.constant 0 : index
    %19 = vector.load %arg7[%c0_8, %c0_9] : memref<16x65xf32, #tpu.memory_space<vmem>>, vector<16x65xf32>
    %cst_10 = arith.constant dense<0.000000e+00> : vector<16x65xf32>
    %20 = tpu.matmul %18, %16, %cst_10 {dimension_numbers = #tpu.dot_dimension_numbers<[1], [0], [0], [1], [0, 0, 1, 1], [], []>} : vector<16x128xf32>, vector<128x65xf32>, vector<16x65xf32> -> vector<16x65xf32>
    %21 = arith.addf %19, %20 : vector<16x65xf32>
    %c0_11 = arith.constant 0 : index
    %c0_12 = arith.constant 0 : index
    %22 = vector.load %arg7[%c0_11, %c0_12] : memref<16x65xf32, #tpu.memory_space<vmem>>, vector<16x65xf32>
    tpu.vector_store %arg7[%c0_11, %c0_12], %21 {strides = array<i32>} : memref<16x65xf32, #tpu.memory_space<vmem>>, vector<16x65xf32>,
    %c0_i32_13 = arith.constant 0 : i32
    %23 = arith.cmpi eq, %arg1, %c0_i32_13 : i32
    %24 = arith.extui %23 : i1 to i32
    %c0_i32_14 = arith.constant 0 : i32
    %25 = arith.cmpi ne, %24, %c0_i32_14 : i32
    scf.if %25 {
      %c0_15 = arith.constant 0 : index
      %c0_16 = arith.constant 0 : index
      %26 = vector.load %arg7[%c0_15, %c0_16] : memref<16x65xf32, #tpu.memory_space<vmem>>, vector<16x65xf32>
      %27 = vector.extract_strided_slice %26 {offsets = [0, 0], sizes = [16, 64], strides = [1, 1]} : vector<16x65xf32> to vector<16x64xf32>
      %28 = vector.extract_strided_slice %26 {offsets = [0, 64], sizes = [16, 1], strides = [1, 1]} : vector<16x65xf32> to vector<16x1xf32>
      %cst_17 = arith.constant 9.99999997E-7 : f32
      %29 = vector.broadcast %cst_17 : f32 to vector<16x1xf32>
      %30 = arith.addf %28, %29 : vector<16x1xf32>
      %31 = vector.broadcast %30 : vector<16x1xf32> to vector<16x64xf32>
      %32 = arith.divf %27, %31 : vector<16x64xf32>
      %c0_18 = arith.constant 0 : index
      %c0_19 = arith.constant 0 : index
      %33 = vector.load %arg6[%c0_18, %c0_19] : memref<16x64xf32, #tpu.memory_space<vmem>>, vector<16x64xf32>
      tpu.vector_store %arg6[%c0_18, %c0_19], %32 {strides = array<i32>} : memref<16x64xf32, #tpu.memory_space<vmem>>, vector<16x64xf32>,
    } else {
    }
    return
  }
  func.func @transform_0(%arg0: i32, %arg1: i32) -> (i32, i32) {
    %c0_i32 = arith.constant 0 : i32
    %c0_i32_0 = arith.constant 0 : i32
    return %arg1, %c0_i32 : i32, i32
  }
  func.func @transform_1(%arg0: i32, %arg1: i32) -> (i32, i32) {
    %c0_i32 = arith.constant 0 : i32
    %c0_i32_0 = arith.constant 0 : i32
    return %arg1, %c0_i32 : i32, i32
  }
  func.func @transform_2(%arg0: i32, %arg1: i32) -> (i32, i32) {
    %c0_i32 = arith.constant 0 : i32
    %c0_i32_0 = arith.constant 0 : i32
    %c0_i32_1 = arith.constant 0 : i32
    return %c0_i32, %c0_i32_0 : i32, i32
  }
  func.func @transform_3(%arg0: i32, %arg1: i32) -> (i32, i32) {
    %c0_i32 = arith.constant 0 : i32
    return %arg0, %arg1 : i32, i32
  }
  func.func @transform_4(%arg0: i32, %arg1: i32) -> (i32, i32) {
    %c0_i32 = arith.constant 0 : i32
    %c0_i32_0 = arith.constant 0 : i32
    return %arg0, %c0_i32 : i32, i32
  }
}

module attributes {stable_mosaic.version = 11 : i64} {
  func.func @_node_proj_kernel(%arg0: i32, %arg1: memref<16x64xf32, #tpu.memory_space<vmem>>, %arg2: memref<64x130xf32, #tpu.memory_space<vmem>>, %arg3: memref<16x130xf32, #tpu.memory_space<vmem>>) attributes {dimension_semantics = [#tpu.dimension_semantics<parallel>], iteration_bounds = array<i64: 1>, scalar_prefetch = 0 : i64, scratch_operands = 0 : i64, tpu.core_type = #tpu.core_type<tc>, window_params = [{transform_indices = @transform_0, window_bounds = array<i64: 16, 64>}, {pipeline_mode = #tpu.pipeline_mode<synchronous>, transform_indices = @transform_1, window_bounds = array<i64: 64, 130>}, {transform_indices = @transform_2, window_bounds = array<i64: 16, 130>}]} {
    %c0 = arith.constant 0 : index
    %c0_0 = arith.constant 0 : index
    %0 = vector.load %arg1[%c0, %c0_0] : memref<16x64xf32, #tpu.memory_space<vmem>>, vector<16x64xf32>
    %c0_1 = arith.constant 0 : index
    %c0_2 = arith.constant 0 : index
    %1 = vector.load %arg2[%c0_1, %c0_2] : memref<64x130xf32, #tpu.memory_space<vmem>>, vector<64x130xf32>
    %cst = arith.constant dense<0.000000e+00> : vector<16x130xf32>
    %2 = tpu.matmul %0, %1, %cst {dimension_numbers = #tpu.dot_dimension_numbers<[1], [0], [0], [1], [0, 0, 1, 1], [], []>} : vector<16x64xf32>, vector<64x130xf32>, vector<16x130xf32> -> vector<16x130xf32>
    %c0_3 = arith.constant 0 : index
    %c0_4 = arith.constant 0 : index
    %3 = vector.load %arg3[%c0_3, %c0_4] : memref<16x130xf32, #tpu.memory_space<vmem>>, vector<16x130xf32>
    tpu.vector_store %arg3[%c0_3, %c0_4], %2 {strides = array<i32>} : memref<16x130xf32, #tpu.memory_space<vmem>>, vector<16x130xf32>,
    return
  }
  func.func @transform_0(%arg0: i32) -> (i32, i32) {
    %c0_i32 = arith.constant 0 : i32
    %c0_i32_0 = arith.constant 0 : i32
    return %arg0, %c0_i32 : i32, i32
  }
  func.func @transform_1(%arg0: i32) -> (i32, i32) {
    %c0_i32 = arith.constant 0 : i32
    %c0_i32_0 = arith.constant 0 : i32
    %c0_i32_1 = arith.constant 0 : i32
    return %c0_i32, %c0_i32_0 : i32, i32
  }
  func.func @transform_2(%arg0: i32) -> (i32, i32) {
    %c0_i32 = arith.constant 0 : i32
    %c0_i32_0 = arith.constant 0 : i32
    return %arg0, %c0_i32 : i32, i32
  }
}

module attributes {stable_mosaic.version = 11 : i64} {
  func.func @_readout_mlp_kernel(%arg0: memref<16x2xf32, #tpu.memory_space<vmem>>, %arg1: memref<16x64xf32, #tpu.memory_space<vmem>>, %arg2: memref<64x32xf32, #tpu.memory_space<vmem>>, %arg3: memref<1x32xf32, #tpu.memory_space<vmem>>, %arg4: memref<32x10xf32, #tpu.memory_space<vmem>>, %arg5: memref<1x10xf32, #tpu.memory_space<vmem>>, %arg6: memref<2x10xf32, #tpu.memory_space<vmem>>) attributes {dimension_semantics = [], scalar_prefetch = 0 : i64, scratch_operands = 0 : i64, tpu.core_type = #tpu.core_type<tc>} {
    %c0 = arith.constant 0 : index
    %c0_0 = arith.constant 0 : index
    %0 = vector.load %arg0[%c0, %c0_0] : memref<16x2xf32, #tpu.memory_space<vmem>>, vector<16x2xf32>
    %c0_1 = arith.constant 0 : index
    %c0_2 = arith.constant 0 : index
    %1 = vector.load %arg1[%c0_1, %c0_2] : memref<16x64xf32, #tpu.memory_space<vmem>>, vector<16x64xf32>
    %cst = arith.constant dense<0.000000e+00> : vector<2x64xf32>
    %2 = tpu.matmul %0, %1, %cst {dimension_numbers = #tpu.dot_dimension_numbers<[0], [0], [1], [1], [0, 1, 1, 1], [], []>} : vector<16x2xf32>, vector<16x64xf32>, vector<2x64xf32> -> vector<2x64xf32>
    %c0_3 = arith.constant 0 : index
    %c0_4 = arith.constant 0 : index
    %3 = vector.load %arg2[%c0_3, %c0_4] : memref<64x32xf32, #tpu.memory_space<vmem>>, vector<64x32xf32>
    %cst_5 = arith.constant dense<0.000000e+00> : vector<2x32xf32>
    %4 = tpu.matmul %2, %3, %cst_5 {dimension_numbers = #tpu.dot_dimension_numbers<[1], [0], [0], [1], [0, 0, 1, 1], [], []>} : vector<2x64xf32>, vector<64x32xf32>, vector<2x32xf32> -> vector<2x32xf32>
    %c0_6 = arith.constant 0 : index
    %c0_7 = arith.constant 0 : index
    %5 = vector.load %arg3[%c0_6, %c0_7] : memref<1x32xf32, #tpu.memory_space<vmem>>, vector<1x32xf32>
    %6 = vector.broadcast %5 : vector<1x32xf32> to vector<2x32xf32>
    %7 = arith.addf %4, %6 : vector<2x32xf32>
    %cst_8 = arith.constant 0.000000e+00 : f32
    %8 = vector.broadcast %cst_8 : f32 to vector<2x32xf32>
    %9 = arith.maximumf %7, %8 : vector<2x32xf32>
    %c0_9 = arith.constant 0 : index
    %c0_10 = arith.constant 0 : index
    %10 = vector.load %arg4[%c0_9, %c0_10] : memref<32x10xf32, #tpu.memory_space<vmem>>, vector<32x10xf32>
    %cst_11 = arith.constant dense<0.000000e+00> : vector<2x10xf32>
    %11 = tpu.matmul %9, %10, %cst_11 {dimension_numbers = #tpu.dot_dimension_numbers<[1], [0], [0], [1], [0, 0, 1, 1], [], []>} : vector<2x32xf32>, vector<32x10xf32>, vector<2x10xf32> -> vector<2x10xf32>
    %c0_12 = arith.constant 0 : index
    %c0_13 = arith.constant 0 : index
    %12 = vector.load %arg5[%c0_12, %c0_13] : memref<1x10xf32, #tpu.memory_space<vmem>>, vector<1x10xf32>
    %13 = vector.broadcast %12 : vector<1x10xf32> to vector<2x10xf32>
    %14 = arith.addf %11, %13 : vector<2x10xf32>
    %c0_14 = arith.constant 0 : index
    %c0_15 = arith.constant 0 : index
    %15 = vector.load %arg6[%c0_14, %c0_15] : memref<2x10xf32, #tpu.memory_space<vmem>>, vector<2x10xf32>
    tpu.vector_store %arg6[%c0_14, %c0_15], %14 {strides = array<i32>} : memref<2x10xf32, #tpu.memory_space<vmem>>, vector<2x10xf32>,
    return
  }
}

</mosaic_0001>

<llo_original>
// kernel: gat_mnist_forward.7
$region0: #{gat_mnist_forward.7}
  #allocation0 [shape = 'u32[]', space=smem, size = 0x4, offset = 0x4, fixed_abs, tag = 'smem constant byte address 0x4 - core index']
  #allocation1 [shape = 'u32[144,128]{1,0:T(1,128)}', space=vmem, size = 0x12000, scoped, tag = 'internal scratch']
  %s0 = inlined_call_operand.vmem [shape: f32[16,4], index: 0, kind: input, shape index: {}]
  %s1 = inlined_call_operand.vmem [shape: f32[4,66], index: 1, kind: input, shape index: {}]
  %s2 = inlined_call_operand.vmem [shape: f32[16,66], index: 2, kind: output, shape index: {}]
  %s3 = sld [smem:[#allocation0]]
  $region18: #{gat_mnist_forward.7} parent=0
    _
  %s5 = ssub.s32 1, %s3
  %s6 = scalar_select 0, %s5, %s3
  // Predicated region
  $region2: #{gat_mnist_forward.7} parent=0 // pred_check
    _
  $region3: #{gat_mnist_forward.7} parent=0 // pred_check_branch
    %8 = sbr.rel (0) target = $region5
  $region4: #{gat_mnist_forward.7} parent=0 // pred_region
    _
  $region5: #{gat_mnist_forward.7} parent=0 // pred_fallthru
    _
  // Predicated region
  $region6: #{gat_mnist_forward.7} parent=0 // pred_check
    _
  $region7: #{gat_mnist_forward.7} parent=0 // pred_check_branch
    %10 = sbr.rel (0) target = $region9
  $region8: #{gat_mnist_forward.7} parent=0 // pred_region
    _
  $region9: #{gat_mnist_forward.7} parent=0 // pred_fallthru
    _
  %v11 = vld [vmem:[%s0] sm:$0xff]
  %v12 = vld [vmem:[%s0 + $0x8] sm:$0xff]
  %v13 = vld [vmem:[%s1] sm:$0xf]
  %vm14 = vcmask 31744
  %v16 = vsel %vm14, %v11, 0
  %v19 = vsel %vm14, %v12, 0
  %vm21 = vcmask 1043456
  %v23 = vsel %vm21, %v13, 0
  %25 = vmatprep.subr.mxu0 0.0
  %26 = vmatpush1.msra.mxu0 0.0
  %27 = vmatprep.subr.mxu0 0.0
  %28 = vmatpush1.msra.mxu0 0.0
  %29 = vmatprep.subr.mxu0 0.0
  %30 = vmatpush1.msra.mxu0 0.0
  %31 = vmatprep.subr.mxu0 0.0
  %32 = vmatpush1.msra.mxu0 0.0
  %33 = vmatprep.subr.mxu0 0.0
  %34 = vmatpush1.msra.mxu0 0.0
  %35 = vmatprep.subr.mxu0 0.0
  %36 = vmatpush1.msra.mxu0 0.0
  %37 = vmatprep.subr.mxu0 0.0
  %38 = vmatpush1.msra.mxu0 0.0
  %39 = vmatprep.subr.mxu0 0.0
  %40 = vmatpush1.msra.mxu0 0.0
  %41 = vmatprep.subr.mxu0 0.0
  %42 = vmatpush1.msra.mxu0 0.0
  %43 = vmatprep.subr.mxu0 0.0
  %44 = vmatpush1.msra.mxu0 0.0
  %45 = vmatprep.subr.mxu0 0.0
  %46 = vmatpush1.msra.mxu0 0.0
  %47 = vmatprep.subr.mxu0 0.0
  %48 = vmatpush1.msra.mxu0 0.0
  %49 = vmatprep.subr.mxu0 0.0
  %50 = vmatpush1.msra.mxu0 0.0
  %51 = vmatprep.subr.mxu0 0.0
  %52 = vmatpush1.msra.mxu0 0.0
  %53 = vmatprep.subr.mxu0 0.0
  %54 = vmatpush1.msra.mxu0 0.0
  %55 = vmatprep.subr.mxu0 0.0
  %56 = vmatpush1.msra.mxu0 %v23
  %57 = vmatprep.subr.mxu0 0.0
  %58 = vmatpush2.msra.mxu0 0.0
  %59 = vmatprep.subr.mxu0 0.0
  %60 = vmatpush2.msra.mxu0 0.0
  %61 = vmatprep.subr.mxu0 0.0
  %62 = vmatpush2.msra.mxu0 0.0
  %63 = vmatprep.subr.mxu0 0.0
  %64 = vmatpush2.msra.mxu0 0.0
  %65 = vmatprep.subr.mxu0 0.0
  %66 = vmatpush2.msra.mxu0 0.0
  %67 = vmatprep.subr.mxu0 0.0
  %68 = vmatpush2.msra.mxu0 0.0
  %69 = vmatprep.subr.mxu0 0.0
  %70 = vmatpush2.msra.mxu0 0.0
  %71 = vmatprep.subr.mxu0 0.0
  %72 = vmatpush2.msra.mxu0 0.0
  %73 = vmatprep.subr.mxu0 0.0
  %74 = vmatpush2.msra.mxu0 0.0
  %75 = vmatprep.subr.mxu0 0.0
  %76 = vmatpush2.msra.mxu0 0.0
  %77 = vmatprep.subr.mxu0 0.0
  %78 = vmatpush2.msra.mxu0 0.0
  %79 = vmatprep.subr.mxu0 0.0
  %80 = vmatpush2.msra.mxu0 0.0
  %81 = vmatprep.subr.mxu0 0.0
  %82 = vmatpush2.msra.mxu0 0.0
  %83 = vmatprep.subr.mxu0 0.0
  %84 = vmatpush2.msra.mxu0 0.0
  %85 = vmatprep.subr.mxu0 0.0
  %86 = vmatpush2.msra.mxu0 0.0
  %87 = vmatprep.subr.mxu0 0.0
  %88 = vmatpush2.msra.mxu0 0.0
  %89 = vmatprep.mubr.f32.mxu0 0.0
  %90 = vmatmul.mubr.f32.gmra.mxu0 %v16
  %v91 = vpop.f32.mrf.mxu0
  %v92 = vadd.f32 0.0, %v91
  %v93 = vpop.f32.mrf.mxu0
  %94 = vmatprep.mubr.f32.mxu0 0.0
  %95 = vmatmul.mubr.f32.gmra.mxu0 %v19
  %v96 = vpop.f32.mrf.mxu0
  %v97 = vadd.f32 0.0, %v96
  %v98 = vpop.f32.mrf.mxu0
  %99 = vdwg.mxu0
  %vm100 = vcmask 539648
  %101 = vst.msk [vmem:[%s2] sm:$0xff] %vm100, %v92
  %102 = vst.msk [vmem:[%s2 + $0x8] sm:$0xff] %vm100, %v97
  // Predicated region
  $region10: #{gat_mnist_forward.7} parent=0 // pred_check
    _
  $region11: #{gat_mnist_forward.7} parent=0 // pred_check_branch
    %104 = sbr.rel (0) target = $region13
  $region12: #{gat_mnist_forward.7} parent=0 // pred_region
    _
  $region13: #{gat_mnist_forward.7} parent=0 // pred_fallthru
    _
  // Predicated region
  $region14: #{gat_mnist_forward.7} parent=0 // pred_check
    _
  $region15: #{gat_mnist_forward.7} parent=0 // pred_check_branch
    %106 = sbr.rel (0) target = $region17
  $region16: #{gat_mnist_forward.7} parent=0 // pred_region
    _
  $region17: #{gat_mnist_forward.7} parent=0 // pred_fallthru
    _

// kernel: gat_mnist_forward.9
$region0: #{gat_mnist_forward.9}
  #allocation0 [shape = 'u32[]', space=smem, size = 0x4, offset = 0x4, fixed_abs, tag = 'smem constant byte address 0x4 - core index']
  #allocation1 [shape = 'u32[144,128]{1,0:T(1,128)}', space=vmem, size = 0x12000, scoped, tag = 'internal scratch']
  %s0 = inlined_call_operand.vmem [shape: f32[16,32], index: 0, kind: input, shape index: {}]
  %s1 = inlined_call_operand.vmem [shape: f32[32,130], index: 1, kind: input, shape index: {}]
  %s2 = inlined_call_operand.vmem [shape: f32[16,130], index: 2, kind: output, shape index: {}]
  %s3 = sld [smem:[#allocation0]]
  $region18: #{gat_mnist_forward.9} parent=0
    _
  %s5 = ssub.s32 1, %s3
  %s6 = scalar_select 0, %s5, %s3
  // Predicated region
  $region2: #{gat_mnist_forward.9} parent=0 // pred_check
    _
  $region3: #{gat_mnist_forward.9} parent=0 // pred_check_branch
    %8 = sbr.rel (0) target = $region5
  $region4: #{gat_mnist_forward.9} parent=0 // pred_region
    _
  $region5: #{gat_mnist_forward.9} parent=0 // pred_fallthru
    _
  // Predicated region
  $region6: #{gat_mnist_forward.9} parent=0 // pred_check
    _
  $region7: #{gat_mnist_forward.9} parent=0 // pred_check_branch
    %10 = sbr.rel (0) target = $region9
  $region8: #{gat_mnist_forward.9} parent=0 // pred_region
    _
  $region9: #{gat_mnist_forward.9} parent=0 // pred_fallthru
    _
  %v11 = vld [vmem:[%s0] sm:$0xff]
  %v12 = vld [vmem:[%s0 + $0x8] sm:$0xff]
  %v13 = vld [vmem:[%s1] sm:$0xff]
  %v14 = vld [vmem:[%s1 + $0x8] sm:$0xff]
  %v15 = vld [vmem:[%s1 + $0x10] sm:$0xff]
  %v16 = vld [vmem:[%s1 + $0x18] sm:$0xff]
  %v17 = vld [vmem:[%s1 + $0x20] sm:$0xff]
  %v18 = vld [vmem:[%s1 + $0x28] sm:$0xff]
  %v19 = vld [vmem:[%s1 + $0x30] sm:$0xff]
  %v20 = vld [vmem:[%s1 + $0x38] sm:$0xff]
  %vm21 = vcmask 261120
  %v23 = vsel %vm21, %v11, 0
  %v26 = vsel %vm21, %v12, 0
  %28 = vmatprep.subr.mxu0 0.0
  %29 = vmatpush1.msra.mxu0 0.0
  %30 = vmatprep.subr.mxu0 0.0
  %31 = vmatpush1.msra.mxu0 0.0
  %32 = vmatprep.subr.mxu0 0.0
  %33 = vmatpush1.msra.mxu0 0.0
  %34 = vmatprep.subr.mxu0 0.0
  %35 = vmatpush1.msra.mxu0 0.0
  %36 = vmatprep.subr.mxu0 0.0
  %37 = vmatpush1.msra.mxu0 0.0
  %38 = vmatprep.subr.mxu0 0.0
  %39 = vmatpush1.msra.mxu0 0.0
  %40 = vmatprep.subr.mxu0 0.0
  %41 = vmatpush1.msra.mxu0 0.0
  %42 = vmatprep.subr.mxu0 0.0
  %43 = vmatpush1.msra.mxu0 0.0
  %44 = vmatprep.subr.mxu0 0.0
  %45 = vmatpush1.msra.mxu0 0.0
  %46 = vmatprep.subr.mxu0 0.0
  %47 = vmatpush1.msra.mxu0 0.0
  %48 = vmatprep.subr.mxu0 0.0
  %49 = vmatpush1.msra.mxu0 0.0
  %50 = vmatprep.subr.mxu0 0.0
  %51 = vmatpush1.msra.mxu0 0.0
  %52 = vmatprep.subr.mxu0 %v20
  %53 = vmatpush1.msra.mxu0 %v19
  %54 = vmatprep.subr.mxu0 %v18
  %55 = vmatpush1.msra.mxu0 %v17
  %56 = vmatprep.subr.mxu0 %v16
  %57 = vmatpush1.msra.mxu0 %v15
  %58 = vmatprep.subr.mxu0 %v14
  %59 = vmatpush1.msra.mxu0 %v13
  %60 = vmatprep.subr.mxu0 0.0
  %61 = vmatpush2.msra.mxu0 0.0
  %62 = vmatprep.subr.mxu0 0.0
  %63 = vmatpush2.msra.mxu0 0.0
  %64 = vmatprep.subr.mxu0 0.0
  %65 = vmatpush2.msra.mxu0 0.0
  %66 = vmatprep.subr.mxu0 0.0
  %67 = vmatpush2.msra.mxu0 0.0
  %68 = vmatprep.subr.mxu0 0.0
  %69 = vmatpush2.msra.mxu0 0.0
  %70 = vmatprep.subr.mxu0 0.0
  %71 = vmatpush2.msra.mxu0 0.0
  %72 = vmatprep.subr.mxu0 0.0
  %73 = vmatpush2.msra.mxu0 0.0
  %74 = vmatprep.subr.mxu0 0.0
  %75 = vmatpush2.msra.mxu0 0.0
  %76 = vmatprep.subr.mxu0 0.0
  %77 = vmatpush2.msra.mxu0 0.0
  %78 = vmatprep.subr.mxu0 0.0
  %79 = vmatpush2.msra.mxu0 0.0
  %80 = vmatprep.subr.mxu0 0.0
  %81 = vmatpush2.msra.mxu0 0.0
  %82 = vmatprep.subr.mxu0 0.0
  %83 = vmatpush2.msra.mxu0 0.0
  %84 = vmatprep.subr.mxu0 0.0
  %85 = vmatpush2.msra.mxu0 0.0
  %86 = vmatprep.subr.mxu0 0.0
  %87 = vmatpush2.msra.mxu0 0.0
  %88 = vmatprep.subr.mxu0 0.0
  %89 = vmatpush2.msra.mxu0 0.0
  %90 = vmatprep.subr.mxu0 0.0
  %91 = vmatpush2.msra.mxu0 0.0
  %92 = vmatprep.mubr.f32.mxu0 0.0
  %93 = vmatmul.mubr.f32.gmra.mxu0 %v23
  %v94 = vpop.f32.mrf.mxu0
  %v95 = vadd.f32 0.0, %v94
  %v96 = vpop.f32.mrf.mxu0
  %v97 = vadd.f32 0.0, %v96
  %98 = vmatprep.mubr.f32.mxu0 0.0
  %99 = vmatmul.mubr.f32.gmra.mxu0 %v26
  %v100 = vpop.f32.mrf.mxu0
  %v101 = vadd.f32 0.0, %v100
  %v102 = vpop.f32.mrf.mxu0
  %v103 = vadd.f32 0.0, %v102
  %104 = vdwg.mxu0
  %105 = vst [vmem:[%s2] sm:$0xff] %v95
  %vm106 = vcmask 15360
  %107 = vst.msk [vmem:[%s2 + $0x8] sm:$0xff] %vm106, %v97
  %108 = vst [vmem:[%s2 + $0x10] sm:$0xff] %v101
  %109 = vst.msk [vmem:[%s2 + $0x18] sm:$0xff] %vm106, %v103
  // Predicated region
  $region10: #{gat_mnist_forward.9} parent=0 // pred_check
    _
  $region11: #{gat_mnist_forward.9} parent=0 // pred_check_branch
    %111 = sbr.rel (0) target = $region13
  $region12: #{gat_mnist_forward.9} parent=0 // pred_region
    _
  $region13: #{gat_mnist_forward.9} parent=0 // pred_fallthru
    _
  // Predicated region
  $region14: #{gat_mnist_forward.9} parent=0 // pred_check
    _
  $region15: #{gat_mnist_forward.9} parent=0 // pred_check_branch
    %113 = sbr.rel (0) target = $region17
  $region16: #{gat_mnist_forward.9} parent=0 // pred_region
    _
  $region17: #{gat_mnist_forward.9} parent=0 // pred_fallthru
    _

// kernel: gat_mnist_forward.8
$region0: #{gat_mnist_forward.8}
  #allocation0 [shape = 'u32[]', space=smem, size = 0x4, offset = 0x4, fixed_abs, tag = 'smem constant byte address 0x4 - core index']
  #allocation1 [shape = 'u32[144,128]{1,0:T(1,128)}', space=vmem, size = 0x12000, scoped, tag = 'internal scratch']
  #allocation2 [shape = 'f32[16,33]{1,0:T(8,128)}', space=vmem, size = 0x2000, scoped, tag = 'scratch operand']
  %s0 = inlined_call_operand.vmem [shape: f32[128,33], index: 0, kind: input, shape index: {}]
  %s1 = inlined_call_operand.vmem [shape: f32[128,33], index: 1, kind: input, shape index: {}]
  %s2 = inlined_call_operand.vmem [shape: f32[1,33], index: 2, kind: input, shape index: {}]
  %s3 = inlined_call_operand.vmem [shape: bf16[16,128], index: 3, kind: input, shape index: {}]
  %s4 = inlined_call_operand.vmem [shape: f32[16,32], index: 4, kind: output, shape index: {}]
  %s5 = sld [smem:[#allocation0]]
  $region34: #{gat_mnist_forward.8} parent=0
    _
  %s7 = ssub.s32 1, %s5
  %s8 = scalar_select 0, %s7, %s5
  // Predicated region
  $region2: #{gat_mnist_forward.8} parent=0 // pred_check
    _
  $region3: #{gat_mnist_forward.8} parent=0 // pred_check_branch
    %10 = sbr.rel (0) target = $region5
  $region4: #{gat_mnist_forward.8} parent=0 // pred_region
    _
  $region5: #{gat_mnist_forward.8} parent=0 // pred_fallthru
    _
  // Predicated region
  $region6: #{gat_mnist_forward.8} parent=0 // pred_check
    _
  $region7: #{gat_mnist_forward.8} parent=0 // pred_check_branch
    %12 = sbr.rel (0) target = $region9
  $region8: #{gat_mnist_forward.8} parent=0 // pred_region
    _
  $region9: #{gat_mnist_forward.8} parent=0 // pred_fallthru
    _
  // Predicated region
  $region10: #{gat_mnist_forward.8} parent=0 // pred_check
    _
  $region11: #{gat_mnist_forward.8} parent=0 // pred_check_branch
    %14 = sbr.rel (0) target = $region13
  $region12: #{gat_mnist_forward.8} parent=0 // pred_region
    _
  $region13: #{gat_mnist_forward.8} parent=0 // pred_fallthru
    _
  // Predicated region
  $region14: #{gat_mnist_forward.8} parent=0 // pred_check
    _
  $region15: #{gat_mnist_forward.8} parent=0 // pred_check_branch
    %16 = sbr.rel (0) target = $region17
  $region16: #{gat_mnist_forward.8} parent=0 // pred_region
    _
  $region17: #{gat_mnist_forward.8} parent=0 // pred_fallthru
    _
  %p17 = scmp.eq.s32.totalorder 0, 0
  // Predicated region
  $region18: #{gat_mnist_forward.8} parent=0 // pred_check
    %p18 = pneg %p17
  $region19: #{gat_mnist_forward.8} parent=0 // pred_check_branch
    %20 = sbr.rel (%p18) target = $region21
  $region20: #{gat_mnist_forward.8} parent=0 // pred_region
    %vm21 = vcmask 269312
    %22 = vst.msk [vmem:[#allocation2] sm:$0xff] %vm21, 0.0
    %23 = vst.msk [vmem:[#allocation2 + $0x8] sm:$0xff] %vm21, 0.0
  $region21: #{gat_mnist_forward.8} parent=0 // pred_fallthru
    _
  %v24 = vld [vmem:[%s0] sm:$0xff]
  %v25 = vld [vmem:[%s0 + $0x8] sm:$0xff]
  %v26 = vld [vmem:[%s0 + $0x10] sm:$0xff]
  %v27 = vld [vmem:[%s0 + $0x18] sm:$0xff]
  %v28 = vld [vmem:[%s0 + $0x20] sm:$0xff]
  %v29 = vld [vmem:[%s0 + $0x28] sm:$0xff]
  %v30 = vld [vmem:[%s0 + $0x30] sm:$0xff]
  %v31 = vld [vmem:[%s0 + $0x38] sm:$0xff]
  %v32 = vld [vmem:[%s0 + $0x40] sm:$0xff]
  %v33 = vld [vmem:[%s0 + $0x48] sm:$0xff]
  %v34 = vld [vmem:[%s0 + $0x50] sm:$0xff]
  %v35 = vld [vmem:[%s0 + $0x58] sm:$0xff]
  %v36 = vld [vmem:[%s0 + $0x60] sm:$0xff]
  %v37 = vld [vmem:[%s0 + $0x68] sm:$0xff]
  %v38 = vld [vmem:[%s0 + $0x70] sm:$0xff]
  %v39 = vld [vmem:[%s0 + $0x78] sm:$0xff]
  %v40 = vld [vmem:[%s1] sm:$0xff]
  %v41 = vld [vmem:[%s1 + $0x8] sm:$0xff]
  %v42 = vld [vmem:[%s1 + $0x10] sm:$0xff]
  %v43 = vld [vmem:[%s1 + $0x18] sm:$0xff]
  %v44 = vld [vmem:[%s1 + $0x20] sm:$0xff]
  %v45 = vld [vmem:[%s1 + $0x28] sm:$0xff]
  %v46 = vld [vmem:[%s1 + $0x30] sm:$0xff]
  %v47 = vld [vmem:[%s1 + $0x38] sm:$0xff]
  %v48 = vld [vmem:[%s1 + $0x40] sm:$0xff]
  %v49 = vld [vmem:[%s1 + $0x48] sm:$0xff]
  %v50 = vld [vmem:[%s1 + $0x50] sm:$0xff]
  %v51 = vld [vmem:[%s1 + $0x58] sm:$0xff]
  %v52 = vld [vmem:[%s1 + $0x60] sm:$0xff]
  %v53 = vld [vmem:[%s1 + $0x68] sm:$0xff]
  %v54 = vld [vmem:[%s1 + $0x70] sm:$0xff]
  %v55 = vld [vmem:[%s1 + $0x78] sm:$0xff]
  %v56 = vadd.f32 %v24, %v40
  %v57 = vadd.f32 %v25, %v41
  %v58 = vadd.f32 %v26, %v42
  %v59 = vadd.f32 %v27, %v43
  %v60 = vadd.f32 %v28, %v44
  %v61 = vadd.f32 %v29, %v45
  %v62 = vadd.f32 %v30, %v46
  %v63 = vadd.f32 %v31, %v47
  %v64 = vadd.f32 %v32, %v48
  %v65 = vadd.f32 %v33, %v49
  %v66 = vadd.f32 %v34, %v50
  %v67 = vadd.f32 %v35, %v51
  %v68 = vadd.f32 %v36, %v52
  %v69 = vadd.f32 %v37, %v53
  %v70 = vadd.f32 %v38, %v54
  %v71 = vadd.f32 %v39, %v55
  %v72 = vld [vmem:[%s2] sm:$0x1]
  %v74 = vlaneseq
  %v75 = vshrl.u32 %v74, 7
  %v76 = vsub.s32 0, %v75
  %v77 = vrot.slane %v72, %v76
  %v79 = vadd.f32 %v56, %v77
  %v80 = vadd.f32 %v57, %v77
  %v81 = vadd.f32 %v58, %v77
  %v82 = vadd.f32 %v59, %v77
  %v83 = vadd.f32 %v60, %v77
  %v84 = vadd.f32 %v61, %v77
  %v85 = vadd.f32 %v62, %v77
  %v86 = vadd.f32 %v63, %v77
  %v87 = vadd.f32 %v64, %v77
  %v88 = vadd.f32 %v65, %v77
  %v89 = vadd.f32 %v66, %v77
  %v90 = vadd.f32 %v67, %v77
  %v91 = vadd.f32 %v68, %v77
  %v92 = vadd.f32 %v69, %v77
  %v93 = vadd.f32 %v70, %v77
  %v94 = vadd.f32 %v71, %v77
  %v95 = vmul.f32 %v79, 1.442695
  %v96 = vpow.pop %v95
  %v97 = vmul.f32 %v80, 1.442695
  %v98 = vpow.pop %v97
  %v99 = vmul.f32 %v81, 1.442695
  %v100 = vpow.pop %v99
  %v101 = vmul.f32 %v82, 1.442695
  %v102 = vpow.pop %v101
  %v103 = vmul.f32 %v83, 1.442695
  %v104 = vpow.pop %v103
  %v105 = vmul.f32 %v84, 1.442695
  %v106 = vpow.pop %v105
  %v107 = vmul.f32 %v85, 1.442695
  %v108 = vpow.pop %v107
  %v109 = vmul.f32 %v86, 1.442695
  %v110 = vpow.pop %v109
  %v111 = vmul.f32 %v87, 1.442695
  %v112 = vpow.pop %v111
  %v113 = vmul.f32 %v88, 1.442695
  %v114 = vpow.pop %v113
  %v115 = vmul.f32 %v89, 1.442695
  %v116 = vpow.pop %v115
  %v117 = vmul.f32 %v90, 1.442695
  %v118 = vpow.pop %v117
  %v119 = vmul.f32 %v91, 1.442695
  %v120 = vpow.pop %v119
  %v121 = vmul.f32 %v92, 1.442695
  %v122 = vpow.pop %v121
  %v123 = vmul.f32 %v93, 1.442695
  %v124 = vpow.pop %v123
  %v125 = vmul.f32 %v94, 1.442695
  %v126 = vpow.pop %v125
  %v127 = vmax.f32 %v79, 0.0
  %v128 = vmax.f32 %v80, 0.0
  %v129 = vmax.f32 %v81, 0.0
  %v130 = vmax.f32 %v82, 0.0
  %v131 = vmax.f32 %v83, 0.0
  %v132 = vmax.f32 %v84, 0.0
  %v133 = vmax.f32 %v85, 0.0
  %v134 = vmax.f32 %v86, 0.0
  %v135 = vmax.f32 %v87, 0.0
  %v136 = vmax.f32 %v88, 0.0
  %v137 = vmax.f32 %v89, 0.0
  %v138 = vmax.f32 %v90, 0.0
  %v139 = vmax.f32 %v91, 0.0
  %v140 = vmax.f32 %v92, 0.0
  %v141 = vmax.f32 %v93, 0.0
  %v142 = vmax.f32 %v94, 0.0
  %144 = vset.pattern.permute.xlu0 32
  %145 = vperm.xlu0 %144, %v96
  %v146 = vpop.permute.xlu0 %145
  %149 = vset.pattern.permute.xlu0 32
  %150 = vperm.xlu0 %149, %v98
  %v151 = vpop.permute.xlu0 %150
  %154 = vset.pattern.permute.xlu0 32
  %155 = vperm.xlu0 %154, %v100
  %v156 = vpop.permute.xlu0 %155
  %159 = vset.pattern.permute.xlu0 32
  %160 = vperm.xlu0 %159, %v102
  %v161 = vpop.permute.xlu0 %160
  %164 = vset.pattern.permute.xlu0 32
  %165 = vperm.xlu0 %164, %v104
  %v166 = vpop.permute.xlu0 %165
  %169 = vset.pattern.permute.xlu0 32
  %170 = vperm.xlu0 %169, %v106
  %v171 = vpop.permute.xlu0 %170
  %174 = vset.pattern.permute.xlu0 32
  %175 = vperm.xlu0 %174, %v108
  %v176 = vpop.permute.xlu0 %175
  %179 = vset.pattern.permute.xlu0 32
  %180 = vperm.xlu0 %179, %v110
  %v181 = vpop.permute.xlu0 %180
  %184 = vset.pattern.permute.xlu0 32
  %185 = vperm.xlu0 %184, %v112
  %v186 = vpop.permute.xlu0 %185
  %189 = vset.pattern.permute.xlu0 32
  %190 = vperm.xlu0 %189, %v114
  %v191 = vpop.permute.xlu0 %190
  %194 = vset.pattern.permute.xlu0 32
  %195 = vperm.xlu0 %194, %v116
  %v196 = vpop.permute.xlu0 %195
  %199 = vset.pattern.permute.xlu0 32
  %200 = vperm.xlu0 %199, %v118
  %v201 = vpop.permute.xlu0 %200
  %204 = vset.pattern.permute.xlu0 32
  %205 = vperm.xlu0 %204, %v120
  %v206 = vpop.permute.xlu0 %205
  %209 = vset.pattern.permute.xlu0 32
  %210 = vperm.xlu0 %209, %v122
  %v211 = vpop.permute.xlu0 %210
  %214 = vset.pattern.permute.xlu0 32
  %215 = vperm.xlu0 %214, %v124
  %v216 = vpop.permute.xlu0 %215
  %219 = vset.pattern.permute.xlu0 32
  %220 = vperm.xlu0 %219, %v126
  %v221 = vpop.permute.xlu0 %220
  %v223 = vmul.f32 %v127, %v146
  %v224 = vmul.f32 %v128, %v151
  %v225 = vmul.f32 %v129, %v156
  %v226 = vmul.f32 %v130, %v161
  %v227 = vmul.f32 %v131, %v166
  %v228 = vmul.f32 %v132, %v171
  %v229 = vmul.f32 %v133, %v176
  %v230 = vmul.f32 %v134, %v181
  %v231 = vmul.f32 %v135, %v186
  %v232 = vmul.f32 %v136, %v191
  %v233 = vmul.f32 %v137, %v196
  %v234 = vmul.f32 %v138, %v201
  %v235 = vmul.f32 %v139, %v206
  %v236 = vmul.f32 %v140, %v211
  %v237 = vmul.f32 %v141, %v216
  %v238 = vmul.f32 %v142, %v221
  %vm239 = vcmask 261120
  %v240 = vsel %vm239, %v223, %v96
  %v241 = vsel %vm239, %v224, %v98
  %v242 = vsel %vm239, %v225, %v100
  %v243 = vsel %vm239, %v226, %v102
  %v244 = vsel %vm239, %v227, %v104
  %v245 = vsel %vm239, %v228, %v106
  %v246 = vsel %vm239, %v229, %v108
  %v247 = vsel %vm239, %v230, %v110
  %v248 = vsel %vm239, %v231, %v112
  %v249 = vsel %vm239, %v232, %v114
  %v250 = vsel %vm239, %v233, %v116
  %v251 = vsel %vm239, %v234, %v118
  %v252 = vsel %vm239, %v235, %v120
  %v253 = vsel %vm239, %v236, %v122
  %v254 = vsel %vm239, %v237, %v124
  %v255 = vsel %vm239, %v238, %v126
  %v256 = vld [vmem:[%s3] sm:$0xf]
  %v257 = vld [vmem:[%s3 + $0x4] sm:$0xf]
  %v258 = vunpack.c.l.bf16 %v256
  %v259 = vunpack.c.l.bf16 %v257
  %v260 = vld [vmem:[#allocation2] sm:$0xff]
  %v261 = vld [vmem:[#allocation2 + $0x8] sm:$0xff]
  %262 = vmatprep.subr.mxu0 0.0
  %263 = vmatpush1.msra.mxu0 %v255
  %264 = vmatprep.subr.mxu0 0.0
  %265 = vmatpush1.msra.mxu0 %v254
  %266 = vmatprep.subr.mxu0 0.0
  %267 = vmatpush1.msra.mxu0 %v253
  %268 = vmatprep.subr.mxu0 0.0
  %269 = vmatpush1.msra.mxu0 %v252
  %270 = vmatprep.subr.mxu0 0.0
  %271 = vmatpush1.msra.mxu0 %v251
  %272 = vmatprep.subr.mxu0 0.0
  %273 = vmatpush1.msra.mxu0 %v250
  %274 = vmatprep.subr.mxu0 0.0
  %275 = vmatpush1.msra.mxu0 %v249
  %276 = vmatprep.subr.mxu0 0.0
  %277 = vmatpush1.msra.mxu0 %v248
  %278 = vmatprep.subr.mxu0 0.0
  %279 = vmatpush1.msra.mxu0 %v247
  %280 = vmatprep.subr.mxu0 0.0
  %281 = vmatpush1.msra.mxu0 %v246
  %282 = vmatprep.subr.mxu0 0.0
  %283 = vmatpush1.msra.mxu0 %v245
  %284 = vmatprep.subr.mxu0 0.0
  %285 = vmatpush1.msra.mxu0 %v244
  %286 = vmatprep.subr.mxu0 0.0
  %287 = vmatpush1.msra.mxu0 %v243
  %288 = vmatprep.subr.mxu0 0.0
  %289 = vmatpush1.msra.mxu0 %v242
  %290 = vmatprep.subr.mxu0 0.0
  %291 = vmatpush1.msra.mxu0 %v241
  %292 = vmatprep.subr.mxu0 0.0
  %293 = vmatpush1.msra.mxu0 %v240
  %294 = vmatprep.subr.mxu0 0.0
  %295 = vmatpush2.msra.mxu0 0.0
  %296 = vmatprep.subr.mxu0 0.0
  %297 = vmatpush2.msra.mxu0 0.0
  %298 = vmatprep.subr.mxu0 0.0
  %299 = vmatpush2.msra.mxu0 0.0
  %300 = vmatprep.subr.mxu0 0.0
  %301 = vmatpush2.msra.mxu0 0.0
  %302 = vmatprep.subr.mxu0 0.0
  %303 = vmatpush2.msra.mxu0 0.0
  %304 = vmatprep.subr.mxu0 0.0
  %305 = vmatpush2.msra.mxu0 0.0
  %306 = vmatprep.subr.mxu0 0.0
  %307 = vmatpush2.msra.mxu0 0.0
  %308 = vmatprep.subr.mxu0 0.0
  %309 = vmatpush2.msra.mxu0 0.0
  %310 = vmatprep.subr.mxu0 0.0
  %311 = vmatpush2.msra.mxu0 0.0
  %312 = vmatprep.subr.mxu0 0.0
  %313 = vmatpush2.msra.mxu0 0.0
  %314 = vmatprep.subr.mxu0 0.0
  %315 = vmatpush2.msra.mxu0 0.0
  %316 = vmatprep.subr.mxu0 0.0
  %317 = vmatpush2.msra.mxu0 0.0
  %318 = vmatprep.subr.mxu0 0.0
  %319 = vmatpush2.msra.mxu0 0.0
  %320 = vmatprep.subr.mxu0 0.0
  %321 = vmatpush2.msra.mxu0 0.0
  %322 = vmatprep.subr.mxu0 0.0
  %323 = vmatpush2.msra.mxu0 0.0
  %324 = vmatprep.subr.mxu0 0.0
  %325 = vmatpush2.msra.mxu0 0.0
  %326 = vmatprep.mubr.f32.mxu0 0.0
  %327 = vmatmul.mubr.f32.gmra.mxu0 %v258
  %v328 = vpop.f32.mrf.mxu0
  %v329 = vadd.f32 0.0, %v328
  %v330 = vpop.f32.mrf.mxu0
  %331 = vmatprep.mubr.f32.mxu0 0.0
  %332 = vmatmul.mubr.f32.gmra.mxu0 %v259
  %v333 = vpop.f32.mrf.mxu0
  %v334 = vadd.f32 0.0, %v333
  %v335 = vpop.f32.mrf.mxu0
  %336 = vdwg.mxu0
  %v337 = vadd.f32 %v260, %v329
  %v338 = vadd.f32 %v261, %v334
  %vm339 = vcmask 269312
  %340 = vst.msk [vmem:[#allocation2] sm:$0xff] %vm339, %v337
  %341 = vst.msk [vmem:[#allocation2 + $0x8] sm:$0xff] %vm339, %v338
  // Predicated region
  $region22: #{gat_mnist_forward.8} parent=0 // pred_check
    %p342 = pneg %p17
  $region23: #{gat_mnist_forward.8} parent=0 // pred_check_branch
    %344 = sbr.rel (%p342) target = $region25
  $region24: #{gat_mnist_forward.8} parent=0 // pred_region
    %v345 = vld [vmem:[#allocation2] sm:$0xff]
    %v346 = vld [vmem:[#allocation2 + $0x8] sm:$0xff]
    %v347 = vadd.f32 %v345, 1e-06
    %v348 = vadd.f32 %v346, 1e-06
    %350 = vset.pattern.permute.xlu0 32
    %351 = vperm.xlu0 %350, %v347
    %v352 = vpop.permute.xlu0 %351
    %355 = vset.pattern.permute.xlu0 32
    %356 = vperm.xlu0 %355, %v348
    %v357 = vpop.permute.xlu0 %356
    %v359 = vrcp.pop %v352
    %v360 = vmul.f32 %v345, %v359
    %v361 = vrcp.pop %v357
    %v362 = vmul.f32 %v346, %v361
    %363 = vst.msk [vmem:[%s4] sm:$0xff] %vm239, %v360
    %364 = vst.msk [vmem:[%s4 + $0x8] sm:$0xff] %vm239, %v362
  $region25: #{gat_mnist_forward.8} parent=0 // pred_fallthru
    _
  // Predicated region
  $region26: #{gat_mnist_forward.8} parent=0 // pred_check
    _
  $region27: #{gat_mnist_forward.8} parent=0 // pred_check_branch
    %366 = sbr.rel (0) target = $region29
  $region28: #{gat_mnist_forward.8} parent=0 // pred_region
    _
  $region29: #{gat_mnist_forward.8} parent=0 // pred_fallthru
    _
  // Predicated region
  $region30: #{gat_mnist_forward.8} parent=0 // pred_check
    _
  $region31: #{gat_mnist_forward.8} parent=0 // pred_check_branch
    %368 = sbr.rel (0) target = $region33
  $region32: #{gat_mnist_forward.8} parent=0 // pred_region
    _
  $region33: #{gat_mnist_forward.8} parent=0 // pred_fallthru
    _

// kernel: gat_mnist_forward.10
$region0: #{gat_mnist_forward.10}
  #allocation0 [shape = 'u32[]', space=smem, size = 0x4, offset = 0x4, fixed_abs, tag = 'smem constant byte address 0x4 - core index']
  #allocation1 [shape = 'u32[144,128]{1,0:T(1,128)}', space=vmem, size = 0x12000, scoped, tag = 'internal scratch']
  #allocation2 [shape = 'f32[16,65]{1,0:T(8,128)}', space=vmem, size = 0x2000, scoped, tag = 'scratch operand']
  %s0 = inlined_call_operand.vmem [shape: f32[128,65], index: 0, kind: input, shape index: {}]
  %s1 = inlined_call_operand.vmem [shape: f32[128,65], index: 1, kind: input, shape index: {}]
  %s2 = inlined_call_operand.vmem [shape: f32[1,65], index: 2, kind: input, shape index: {}]
  %s3 = inlined_call_operand.vmem [shape: bf16[16,128], index: 3, kind: input, shape index: {}]
  %s4 = inlined_call_operand.vmem [shape: f32[16,64], index: 4, kind: output, shape index: {}]
  %s5 = sld [smem:[#allocation0]]
  $region34: #{gat_mnist_forward.10} parent=0
    _
  %s7 = ssub.s32 1, %s5
  %s8 = scalar_select 0, %s7, %s5
  // Predicated region
  $region2: #{gat_mnist_forward.10} parent=0 // pred_check
    _
  $region3: #{gat_mnist_forward.10} parent=0 // pred_check_branch
    %10 = sbr.rel (0) target = $region5
  $region4: #{gat_mnist_forward.10} parent=0 // pred_region
    _
  $region5: #{gat_mnist_forward.10} parent=0 // pred_fallthru
    _
  // Predicated region
  $region6: #{gat_mnist_forward.10} parent=0 // pred_check
    _
  $region7: #{gat_mnist_forward.10} parent=0 // pred_check_branch
    %12 = sbr.rel (0) target = $region9
  $region8: #{gat_mnist_forward.10} parent=0 // pred_region
    _
  $region9: #{gat_mnist_forward.10} parent=0 // pred_fallthru
    _
  // Predicated region
  $region10: #{gat_mnist_forward.10} parent=0 // pred_check
    _
  $region11: #{gat_mnist_forward.10} parent=0 // pred_check_branch
    %14 = sbr.rel (0) target = $region13
  $region12: #{gat_mnist_forward.10} parent=0 // pred_region
    _
  $region13: #{gat_mnist_forward.10} parent=0 // pred_fallthru
    _
  // Predicated region
  $region14: #{gat_mnist_forward.10} parent=0 // pred_check
    _
  $region15: #{gat_mnist_forward.10} parent=0 // pred_check_branch
    %16 = sbr.rel (0) target = $region17
  $region16: #{gat_mnist_forward.10} parent=0 // pred_region
    _
  $region17: #{gat_mnist_forward.10} parent=0 // pred_fallthru
    _
  %p17 = scmp.eq.s32.totalorder 0, 0
  // Predicated region
  $region18: #{gat_mnist_forward.10} parent=0 // pred_check
    %p18 = pneg %p17
  $region19: #{gat_mnist_forward.10} parent=0 // pred_check_branch
    %20 = sbr.rel (%p18) target = $region21
  $region20: #{gat_mnist_forward.10} parent=0 // pred_region
    %vm21 = vcmask 531456
    %22 = vst.msk [vmem:[#allocation2] sm:$0xff] %vm21, 0.0
    %23 = vst.msk [vmem:[#allocation2 + $0x8] sm:$0xff] %vm21, 0.0
  $region21: #{gat_mnist_forward.10} parent=0 // pred_fallthru
    _
  %v24 = vld [vmem:[%s0] sm:$0xff]
  %v25 = vld [vmem:[%s0 + $0x8] sm:$0xff]
  %v26 = vld [vmem:[%s0 + $0x10] sm:$0xff]
  %v27 = vld [vmem:[%s0 + $0x18] sm:$0xff]
  %v28 = vld [vmem:[%s0 + $0x20] sm:$0xff]
  %v29 = vld [vmem:[%s0 + $0x28] sm:$0xff]
  %v30 = vld [vmem:[%s0 + $0x30] sm:$0xff]
  %v31 = vld [vmem:[%s0 + $0x38] sm:$0xff]
  %v32 = vld [vmem:[%s0 + $0x40] sm:$0xff]
  %v33 = vld [vmem:[%s0 + $0x48] sm:$0xff]
  %v34 = vld [vmem:[%s0 + $0x50] sm:$0xff]
  %v35 = vld [vmem:[%s0 + $0x58] sm:$0xff]
  %v36 = vld [vmem:[%s0 + $0x60] sm:$0xff]
  %v37 = vld [vmem:[%s0 + $0x68] sm:$0xff]
  %v38 = vld [vmem:[%s0 + $0x70] sm:$0xff]
  %v39 = vld [vmem:[%s0 + $0x78] sm:$0xff]
  %v40 = vld [vmem:[%s1] sm:$0xff]
  %v41 = vld [vmem:[%s1 + $0x8] sm:$0xff]
  %v42 = vld [vmem:[%s1 + $0x10] sm:$0xff]
  %v43 = vld [vmem:[%s1 + $0x18] sm:$0xff]
  %v44 = vld [vmem:[%s1 + $0x20] sm:$0xff]
  %v45 = vld [vmem:[%s1 + $0x28] sm:$0xff]
  %v46 = vld [vmem:[%s1 + $0x30] sm:$0xff]
  %v47 = vld [vmem:[%s1 + $0x38] sm:$0xff]
  %v48 = vld [vmem:[%s1 + $0x40] sm:$0xff]
  %v49 = vld [vmem:[%s1 + $0x48] sm:$0xff]
  %v50 = vld [vmem:[%s1 + $0x50] sm:$0xff]
  %v51 = vld [vmem:[%s1 + $0x58] sm:$0xff]
  %v52 = vld [vmem:[%s1 + $0x60] sm:$0xff]
  %v53 = vld [vmem:[%s1 + $0x68] sm:$0xff]
  %v54 = vld [vmem:[%s1 + $0x70] sm:$0xff]
  %v55 = vld [vmem:[%s1 + $0x78] sm:$0xff]
  %v56 = vadd.f32 %v24, %v40
  %v57 = vadd.f32 %v25, %v41
  %v58 = vadd.f32 %v26, %v42
  %v59 = vadd.f32 %v27, %v43
  %v60 = vadd.f32 %v28, %v44
  %v61 = vadd.f32 %v29, %v45
  %v62 = vadd.f32 %v30, %v46
  %v63 = vadd.f32 %v31, %v47
  %v64 = vadd.f32 %v32, %v48
  %v65 = vadd.f32 %v33, %v49
  %v66 = vadd.f32 %v34, %v50
  %v67 = vadd.f32 %v35, %v51
  %v68 = vadd.f32 %v36, %v52
  %v69 = vadd.f32 %v37, %v53
  %v70 = vadd.f32 %v38, %v54
  %v71 = vadd.f32 %v39, %v55
  %v72 = vld [vmem:[%s2] sm:$0x1]
  %v74 = vlaneseq
  %v75 = vshrl.u32 %v74, 7
  %v76 = vsub.s32 0, %v75
  %v77 = vrot.slane %v72, %v76
  %v79 = vadd.f32 %v56, %v77
  %v80 = vadd.f32 %v57, %v77
  %v81 = vadd.f32 %v58, %v77
  %v82 = vadd.f32 %v59, %v77
  %v83 = vadd.f32 %v60, %v77
  %v84 = vadd.f32 %v61, %v77
  %v85 = vadd.f32 %v62, %v77
  %v86 = vadd.f32 %v63, %v77
  %v87 = vadd.f32 %v64, %v77
  %v88 = vadd.f32 %v65, %v77
  %v89 = vadd.f32 %v66, %v77
  %v90 = vadd.f32 %v67, %v77
  %v91 = vadd.f32 %v68, %v77
  %v92 = vadd.f32 %v69, %v77
  %v93 = vadd.f32 %v70, %v77
  %v94 = vadd.f32 %v71, %v77
  %v95 = vmul.f32 %v79, 1.442695
  %v96 = vpow.pop %v95
  %v97 = vmul.f32 %v80, 1.442695
  %v98 = vpow.pop %v97
  %v99 = vmul.f32 %v81, 1.442695
  %v100 = vpow.pop %v99
  %v101 = vmul.f32 %v82, 1.442695
  %v102 = vpow.pop %v101
  %v103 = vmul.f32 %v83, 1.442695
  %v104 = vpow.pop %v103
  %v105 = vmul.f32 %v84, 1.442695
  %v106 = vpow.pop %v105
  %v107 = vmul.f32 %v85, 1.442695
  %v108 = vpow.pop %v107
  %v109 = vmul.f32 %v86, 1.442695
  %v110 = vpow.pop %v109
  %v111 = vmul.f32 %v87, 1.442695
  %v112 = vpow.pop %v111
  %v113 = vmul.f32 %v88, 1.442695
  %v114 = vpow.pop %v113
  %v115 = vmul.f32 %v89, 1.442695
  %v116 = vpow.pop %v115
  %v117 = vmul.f32 %v90, 1.442695
  %v118 = vpow.pop %v117
  %v119 = vmul.f32 %v91, 1.442695
  %v120 = vpow.pop %v119
  %v121 = vmul.f32 %v92, 1.442695
  %v122 = vpow.pop %v121
  %v123 = vmul.f32 %v93, 1.442695
  %v124 = vpow.pop %v123
  %v125 = vmul.f32 %v94, 1.442695
  %v126 = vpow.pop %v125
  %v127 = vmax.f32 %v79, 0.0
  %v128 = vmax.f32 %v80, 0.0
  %v129 = vmax.f32 %v81, 0.0
  %v130 = vmax.f32 %v82, 0.0
  %v131 = vmax.f32 %v83, 0.0
  %v132 = vmax.f32 %v84, 0.0
  %v133 = vmax.f32 %v85, 0.0
  %v134 = vmax.f32 %v86, 0.0
  %v135 = vmax.f32 %v87, 0.0
  %v136 = vmax.f32 %v88, 0.0
  %v137 = vmax.f32 %v89, 0.0
  %v138 = vmax.f32 %v90, 0.0
  %v139 = vmax.f32 %v91, 0.0
  %v140 = vmax.f32 %v92, 0.0
  %v141 = vmax.f32 %v93, 0.0
  %v142 = vmax.f32 %v94, 0.0
  %144 = vset.pattern.permute.xlu0 64
  %145 = vperm.xlu0 %144, %v96
  %v146 = vpop.permute.xlu0 %145
  %149 = vset.pattern.permute.xlu0 64
  %150 = vperm.xlu0 %149, %v98
  %v151 = vpop.permute.xlu0 %150
  %154 = vset.pattern.permute.xlu0 64
  %155 = vperm.xlu0 %154, %v100
  %v156 = vpop.permute.xlu0 %155
  %159 = vset.pattern.permute.xlu0 64
  %160 = vperm.xlu0 %159, %v102
  %v161 = vpop.permute.xlu0 %160
  %164 = vset.pattern.permute.xlu0 64
  %165 = vperm.xlu0 %164, %v104
  %v166 = vpop.permute.xlu0 %165
  %169 = vset.pattern.permute.xlu0 64
  %170 = vperm.xlu0 %169, %v106
  %v171 = vpop.permute.xlu0 %170
  %174 = vset.pattern.permute.xlu0 64
  %175 = vperm.xlu0 %174, %v108
  %v176 = vpop.permute.xlu0 %175
  %179 = vset.pattern.permute.xlu0 64
  %180 = vperm.xlu0 %179, %v110
  %v181 = vpop.permute.xlu0 %180
  %184 = vset.pattern.permute.xlu0 64
  %185 = vperm.xlu0 %184, %v112
  %v186 = vpop.permute.xlu0 %185
  %189 = vset.pattern.permute.xlu0 64
  %190 = vperm.xlu0 %189, %v114
  %v191 = vpop.permute.xlu0 %190
  %194 = vset.pattern.permute.xlu0 64
  %195 = vperm.xlu0 %194, %v116
  %v196 = vpop.permute.xlu0 %195
  %199 = vset.pattern.permute.xlu0 64
  %200 = vperm.xlu0 %199, %v118
  %v201 = vpop.permute.xlu0 %200
  %204 = vset.pattern.permute.xlu0 64
  %205 = vperm.xlu0 %204, %v120
  %v206 = vpop.permute.xlu0 %205
  %209 = vset.pattern.permute.xlu0 64
  %210 = vperm.xlu0 %209, %v122
  %v211 = vpop.permute.xlu0 %210
  %214 = vset.pattern.permute.xlu0 64
  %215 = vperm.xlu0 %214, %v124
  %v216 = vpop.permute.xlu0 %215
  %219 = vset.pattern.permute.xlu0 64
  %220 = vperm.xlu0 %219, %v126
  %v221 = vpop.permute.xlu0 %220
  %v223 = vmul.f32 %v127, %v146
  %v224 = vmul.f32 %v128, %v151
  %v225 = vmul.f32 %v129, %v156
  %v226 = vmul.f32 %v130, %v161
  %v227 = vmul.f32 %v131, %v166
  %v228 = vmul.f32 %v132, %v171
  %v229 = vmul.f32 %v133, %v176
  %v230 = vmul.f32 %v134, %v181
  %v231 = vmul.f32 %v135, %v186
  %v232 = vmul.f32 %v136, %v191
  %v233 = vmul.f32 %v137, %v196
  %v234 = vmul.f32 %v138, %v201
  %v235 = vmul.f32 %v139, %v206
  %v236 = vmul.f32 %v140, %v211
  %v237 = vmul.f32 %v141, %v216
  %v238 = vmul.f32 %v142, %v221
  %vm239 = vcmask 523264
  %v240 = vsel %vm239, %v223, %v96
  %v241 = vsel %vm239, %v224, %v98
  %v242 = vsel %vm239, %v225, %v100
  %v243 = vsel %vm239, %v226, %v102
  %v244 = vsel %vm239, %v227, %v104
  %v245 = vsel %vm239, %v228, %v106
  %v246 = vsel %vm239, %v229, %v108
  %v247 = vsel %vm239, %v230, %v110
  %v248 = vsel %vm239, %v231, %v112
  %v249 = vsel %vm239, %v232, %v114
  %v250 = vsel %vm239, %v233, %v116
  %v251 = vsel %vm239, %v234, %v118
  %v252 = vsel %vm239, %v235, %v120
  %v253 = vsel %vm239, %v236, %v122
  %v254 = vsel %vm239, %v237, %v124
  %v255 = vsel %vm239, %v238, %v126
  %v256 = vld [vmem:[%s3] sm:$0xf]
  %v257 = vld [vmem:[%s3 + $0x4] sm:$0xf]
  %v258 = vunpack.c.l.bf16 %v256
  %v259 = vunpack.c.l.bf16 %v257
  %v260 = vld [vmem:[#allocation2] sm:$0xff]
  %v261 = vld [vmem:[#allocation2 + $0x8] sm:$0xff]
  %262 = vmatprep.subr.mxu0 0.0
  %263 = vmatpush1.msra.mxu0 %v255
  %264 = vmatprep.subr.mxu0 0.0
  %265 = vmatpush1.msra.mxu0 %v254
  %266 = vmatprep.subr.mxu0 0.0
  %267 = vmatpush1.msra.mxu0 %v253
  %268 = vmatprep.subr.mxu0 0.0
  %269 = vmatpush1.msra.mxu0 %v252
  %270 = vmatprep.subr.mxu0 0.0
  %271 = vmatpush1.msra.mxu0 %v251
  %272 = vmatprep.subr.mxu0 0.0
  %273 = vmatpush1.msra.mxu0 %v250
  %274 = vmatprep.subr.mxu0 0.0
  %275 = vmatpush1.msra.mxu0 %v249
  %276 = vmatprep.subr.mxu0 0.0
  %277 = vmatpush1.msra.mxu0 %v248
  %278 = vmatprep.subr.mxu0 0.0
  %279 = vmatpush1.msra.mxu0 %v247
  %280 = vmatprep.subr.mxu0 0.0
  %281 = vmatpush1.msra.mxu0 %v246
  %282 = vmatprep.subr.mxu0 0.0
  %283 = vmatpush1.msra.mxu0 %v245
  %284 = vmatprep.subr.mxu0 0.0
  %285 = vmatpush1.msra.mxu0 %v244
  %286 = vmatprep.subr.mxu0 0.0
  %287 = vmatpush1.msra.mxu0 %v243
  %288 = vmatprep.subr.mxu0 0.0
  %289 = vmatpush1.msra.mxu0 %v242
  %290 = vmatprep.subr.mxu0 0.0
  %291 = vmatpush1.msra.mxu0 %v241
  %292 = vmatprep.subr.mxu0 0.0
  %293 = vmatpush1.msra.mxu0 %v240
  %294 = vmatprep.subr.mxu0 0.0
  %295 = vmatpush2.msra.mxu0 0.0
  %296 = vmatprep.subr.mxu0 0.0
  %297 = vmatpush2.msra.mxu0 0.0
  %298 = vmatprep.subr.mxu0 0.0
  %299 = vmatpush2.msra.mxu0 0.0
  %300 = vmatprep.subr.mxu0 0.0
  %301 = vmatpush2.msra.mxu0 0.0
  %302 = vmatprep.subr.mxu0 0.0
  %303 = vmatpush2.msra.mxu0 0.0
  %304 = vmatprep.subr.mxu0 0.0
  %305 = vmatpush2.msra.mxu0 0.0
  %306 = vmatprep.subr.mxu0 0.0
  %307 = vmatpush2.msra.mxu0 0.0
  %308 = vmatprep.subr.mxu0 0.0
  %309 = vmatpush2.msra.mxu0 0.0
  %310 = vmatprep.subr.mxu0 0.0
  %311 = vmatpush2.msra.mxu0 0.0
  %312 = vmatprep.subr.mxu0 0.0
  %313 = vmatpush2.msra.mxu0 0.0
  %314 = vmatprep.subr.mxu0 0.0
  %315 = vmatpush2.msra.mxu0 0.0
  %316 = vmatprep.subr.mxu0 0.0
  %317 = vmatpush2.msra.mxu0 0.0
  %318 = vmatprep.subr.mxu0 0.0
  %319 = vmatpush2.msra.mxu0 0.0
  %320 = vmatprep.subr.mxu0 0.0
  %321 = vmatpush2.msra.mxu0 0.0
  %322 = vmatprep.subr.mxu0 0.0
  %323 = vmatpush2.msra.mxu0 0.0
  %324 = vmatprep.subr.mxu0 0.0
  %325 = vmatpush2.msra.mxu0 0.0
  %326 = vmatprep.mubr.f32.mxu0 0.0
  %327 = vmatmul.mubr.f32.gmra.mxu0 %v258
  %v328 = vpop.f32.mrf.mxu0
  %v329 = vadd.f32 0.0, %v328
  %v330 = vpop.f32.mrf.mxu0
  %331 = vmatprep.mubr.f32.mxu0 0.0
  %332 = vmatmul.mubr.f32.gmra.mxu0 %v259
  %v333 = vpop.f32.mrf.mxu0
  %v334 = vadd.f32 0.0, %v333
  %v335 = vpop.f32.mrf.mxu0
  %336 = vdwg.mxu0
  %v337 = vadd.f32 %v260, %v329
  %v338 = vadd.f32 %v261, %v334
  %vm339 = vcmask 531456
  %340 = vst.msk [vmem:[#allocation2] sm:$0xff] %vm339, %v337
  %341 = vst.msk [vmem:[#allocation2 + $0x8] sm:$0xff] %vm339, %v338
  // Predicated region
  $region22: #{gat_mnist_forward.10} parent=0 // pred_check
    %p342 = pneg %p17
  $region23: #{gat_mnist_forward.10} parent=0 // pred_check_branch
    %344 = sbr.rel (%p342) target = $region25
  $region24: #{gat_mnist_forward.10} parent=0 // pred_region
    %v345 = vld [vmem:[#allocation2] sm:$0xff]
    %v346 = vld [vmem:[#allocation2 + $0x8] sm:$0xff]
    %v347 = vadd.f32 %v345, 1e-06
    %v348 = vadd.f32 %v346, 1e-06
    %350 = vset.pattern.permute.xlu0 64
    %351 = vperm.xlu0 %350, %v347
    %v352 = vpop.permute.xlu0 %351
    %355 = vset.pattern.permute.xlu0 64
    %356 = vperm.xlu0 %355, %v348
    %v357 = vpop.permute.xlu0 %356
    %v359 = vrcp.pop %v352
    %v360 = vmul.f32 %v345, %v359
    %v361 = vrcp.pop %v357
    %v362 = vmul.f32 %v346, %v361
    %363 = vst.msk [vmem:[%s4] sm:$0xff] %vm239, %v360
    %364 = vst.msk [vmem:[%s4 + $0x8] sm:$0xff] %vm239, %v362
  $region25: #{gat_mnist_forward.10} parent=0 // pred_fallthru
    _
  // Predicated region
  $region26: #{gat_mnist_forward.10} parent=0 // pred_check
    _
  $region27: #{gat_mnist_forward.10} parent=0 // pred_check_branch
    %366 = sbr.rel (0) target = $region29
  $region28: #{gat_mnist_forward.10} parent=0 // pred_region
    _
  $region29: #{gat_mnist_forward.10} parent=0 // pred_fallthru
    _
  // Predicated region
  $region30: #{gat_mnist_forward.10} parent=0 // pred_check
    _
  $region31: #{gat_mnist_forward.10} parent=0 // pred_check_branch
    %368 = sbr.rel (0) target = $region33
  $region32: #{gat_mnist_forward.10} parent=0 // pred_region
    _
  $region33: #{gat_mnist_forward.10} parent=0 // pred_fallthru
    _

// kernel: gat_mnist_forward.11
$region0: #{gat_mnist_forward.11}
  #allocation0 [shape = 'u32[]', space=smem, size = 0x4, offset = 0x4, fixed_abs, tag = 'smem constant byte address 0x4 - core index']
  #allocation1 [shape = 'u32[144,128]{1,0:T(1,128)}', space=vmem, size = 0x12000, scoped, tag = 'internal scratch']
  %s0 = inlined_call_operand.vmem [shape: f32[16,64], index: 0, kind: input, shape index: {}]
  %s1 = inlined_call_operand.vmem [shape: f32[64,130], index: 1, kind: input, shape index: {}]
  %s2 = inlined_call_operand.vmem [shape: f32[16,130], index: 2, kind: output, shape index: {}]
  %s3 = sld [smem:[#allocation0]]
  $region18: #{gat_mnist_forward.11} parent=0
    _
  %s5 = ssub.s32 1, %s3
  %s6 = scalar_select 0, %s5, %s3
  // Predicated region
  $region2: #{gat_mnist_forward.11} parent=0 // pred_check
    _
  $region3: #{gat_mnist_forward.11} parent=0 // pred_check_branch
    %8 = sbr.rel (0) target = $region5
  $region4: #{gat_mnist_forward.11} parent=0 // pred_region
    _
  $region5: #{gat_mnist_forward.11} parent=0 // pred_fallthru
    _
  // Predicated region
  $region6: #{gat_mnist_forward.11} parent=0 // pred_check
    _
  $region7: #{gat_mnist_forward.11} parent=0 // pred_check_branch
    %10 = sbr.rel (0) target = $region9
  $region8: #{gat_mnist_forward.11} parent=0 // pred_region
    _
  $region9: #{gat_mnist_forward.11} parent=0 // pred_fallthru
    _
  %v11 = vld [vmem:[%s0] sm:$0xff]
  %v12 = vld [vmem:[%s0 + $0x8] sm:$0xff]
  %v13 = vld [vmem:[%s1] sm:$0xff]
  %v14 = vld [vmem:[%s1 + $0x8] sm:$0xff]
  %v15 = vld [vmem:[%s1 + $0x10] sm:$0xff]
  %v16 = vld [vmem:[%s1 + $0x18] sm:$0xff]
  %v17 = vld [vmem:[%s1 + $0x20] sm:$0xff]
  %v18 = vld [vmem:[%s1 + $0x28] sm:$0xff]
  %v19 = vld [vmem:[%s1 + $0x30] sm:$0xff]
  %v20 = vld [vmem:[%s1 + $0x38] sm:$0xff]
  %v21 = vld [vmem:[%s1 + $0x40] sm:$0xff]
  %v22 = vld [vmem:[%s1 + $0x48] sm:$0xff]
  %v23 = vld [vmem:[%s1 + $0x50] sm:$0xff]
  %v24 = vld [vmem:[%s1 + $0x58] sm:$0xff]
  %v25 = vld [vmem:[%s1 + $0x60] sm:$0xff]
  %v26 = vld [vmem:[%s1 + $0x68] sm:$0xff]
  %v27 = vld [vmem:[%s1 + $0x70] sm:$0xff]
  %v28 = vld [vmem:[%s1 + $0x78] sm:$0xff]
  %vm29 = vcmask 523264
  %v31 = vsel %vm29, %v11, 0
  %v34 = vsel %vm29, %v12, 0
  %36 = vmatprep.subr.mxu0 0.0
  %37 = vmatpush1.msra.mxu0 0.0
  %38 = vmatprep.subr.mxu0 0.0
  %39 = vmatpush1.msra.mxu0 0.0
  %40 = vmatprep.subr.mxu0 0.0
  %41 = vmatpush1.msra.mxu0 0.0
  %42 = vmatprep.subr.mxu0 0.0
  %43 = vmatpush1.msra.mxu0 0.0
  %44 = vmatprep.subr.mxu0 0.0
  %45 = vmatpush1.msra.mxu0 0.0
  %46 = vmatprep.subr.mxu0 0.0
  %47 = vmatpush1.msra.mxu0 0.0
  %48 = vmatprep.subr.mxu0 0.0
  %49 = vmatpush1.msra.mxu0 0.0
  %50 = vmatprep.subr.mxu0 0.0
  %51 = vmatpush1.msra.mxu0 0.0
  %52 = vmatprep.subr.mxu0 %v28
  %53 = vmatpush1.msra.mxu0 %v27
  %54 = vmatprep.subr.mxu0 %v26
  %55 = vmatpush1.msra.mxu0 %v25
  %56 = vmatprep.subr.mxu0 %v24
  %57 = vmatpush1.msra.mxu0 %v23
  %58 = vmatprep.subr.mxu0 %v22
  %59 = vmatpush1.msra.mxu0 %v21
  %60 = vmatprep.subr.mxu0 %v20
  %61 = vmatpush1.msra.mxu0 %v19
  %62 = vmatprep.subr.mxu0 %v18
  %63 = vmatpush1.msra.mxu0 %v17
  %64 = vmatprep.subr.mxu0 %v16
  %65 = vmatpush1.msra.mxu0 %v15
  %66 = vmatprep.subr.mxu0 %v14
  %67 = vmatpush1.msra.mxu0 %v13
  %68 = vmatprep.subr.mxu0 0.0
  %69 = vmatpush2.msra.mxu0 0.0
  %70 = vmatprep.subr.mxu0 0.0
  %71 = vmatpush2.msra.mxu0 0.0
  %72 = vmatprep.subr.mxu0 0.0
  %73 = vmatpush2.msra.mxu0 0.0
  %74 = vmatprep.subr.mxu0 0.0
  %75 = vmatpush2.msra.mxu0 0.0
  %76 = vmatprep.subr.mxu0 0.0
  %77 = vmatpush2.msra.mxu0 0.0
  %78 = vmatprep.subr.mxu0 0.0
  %79 = vmatpush2.msra.mxu0 0.0
  %80 = vmatprep.subr.mxu0 0.0
  %81 = vmatpush2.msra.mxu0 0.0
  %82 = vmatprep.subr.mxu0 0.0
  %83 = vmatpush2.msra.mxu0 0.0
  %84 = vmatprep.subr.mxu0 0.0
  %85 = vmatpush2.msra.mxu0 0.0
  %86 = vmatprep.subr.mxu0 0.0
  %87 = vmatpush2.msra.mxu0 0.0
  %88 = vmatprep.subr.mxu0 0.0
  %89 = vmatpush2.msra.mxu0 0.0
  %90 = vmatprep.subr.mxu0 0.0
  %91 = vmatpush2.msra.mxu0 0.0
  %92 = vmatprep.subr.mxu0 0.0
  %93 = vmatpush2.msra.mxu0 0.0
  %94 = vmatprep.subr.mxu0 0.0
  %95 = vmatpush2.msra.mxu0 0.0
  %96 = vmatprep.subr.mxu0 0.0
  %97 = vmatpush2.msra.mxu0 0.0
  %98 = vmatprep.subr.mxu0 0.0
  %99 = vmatpush2.msra.mxu0 0.0
  %100 = vmatprep.mubr.f32.mxu0 0.0
  %101 = vmatmul.mubr.f32.gmra.mxu0 %v31
  %v102 = vpop.f32.mrf.mxu0
  %v103 = vadd.f32 0.0, %v102
  %v104 = vpop.f32.mrf.mxu0
  %v105 = vadd.f32 0.0, %v104
  %106 = vmatprep.mubr.f32.mxu0 0.0
  %107 = vmatmul.mubr.f32.gmra.mxu0 %v34
  %v108 = vpop.f32.mrf.mxu0
  %v109 = vadd.f32 0.0, %v108
  %v110 = vpop.f32.mrf.mxu0
  %v111 = vadd.f32 0.0, %v110
  %112 = vdwg.mxu0
  %113 = vst [vmem:[%s2] sm:$0xff] %v103
  %vm114 = vcmask 15360
  %115 = vst.msk [vmem:[%s2 + $0x8] sm:$0xff] %vm114, %v105
  %116 = vst [vmem:[%s2 + $0x10] sm:$0xff] %v109
  %117 = vst.msk [vmem:[%s2 + $0x18] sm:$0xff] %vm114, %v111
  // Predicated region
  $region10: #{gat_mnist_forward.11} parent=0 // pred_check
    _
  $region11: #{gat_mnist_forward.11} parent=0 // pred_check_branch
    %119 = sbr.rel (0) target = $region13
  $region12: #{gat_mnist_forward.11} parent=0 // pred_region
    _
  $region13: #{gat_mnist_forward.11} parent=0 // pred_fallthru
    _
  // Predicated region
  $region14: #{gat_mnist_forward.11} parent=0 // pred_check
    _
  $region15: #{gat_mnist_forward.11} parent=0 // pred_check_branch
    %121 = sbr.rel (0) target = $region17
  $region16: #{gat_mnist_forward.11} parent=0 // pred_region
    _
  $region17: #{gat_mnist_forward.11} parent=0 // pred_fallthru
    _

// kernel: gat_mnist_forward.13
$region0: #{gat_mnist_forward.13}
  #allocation0 [shape = 'u32[]', space=smem, size = 0x4, offset = 0x4, fixed_abs, tag = 'smem constant byte address 0x4 - core index']
  #allocation1 [shape = 'u32[144,128]{1,0:T(1,128)}', space=vmem, size = 0x12000, scoped, tag = 'internal scratch']
  %s0 = inlined_call_operand.vmem [shape: f32[16,2], index: 0, kind: input, shape index: {}]
  %s1 = inlined_call_operand.vmem [shape: f32[16,64], index: 1, kind: input, shape index: {}]
  %s2 = inlined_call_operand.vmem [shape: f32[64,32], index: 2, kind: input, shape index: {}]
  %s3 = inlined_call_operand.vmem [shape: f32[1,32], index: 3, kind: input, shape index: {}]
  %s4 = inlined_call_operand.vmem [shape: f32[32,10], index: 4, kind: input, shape index: {}]
  %s5 = inlined_call_operand.vmem [shape: f32[1,10], index: 5, kind: input, shape index: {}]
  %s6 = inlined_call_operand.hbm [shape: f32[2,10], index: 6, kind: output, shape index: {}]
  %s7 = sld [smem:[#allocation0]]
  $region34: #{gat_mnist_forward.13} parent=0
    _
  %s9 = ssub.s32 1, %s7
  %s10 = scalar_select 0, %s9, %s7
  $region1: #{gat_mnist_forward.13} parent=0
    #allocation2 [shape = 'u8[1024]{0}', space=vmem, size = 0x400, scoped, tag = 'output window, operand 0, single buffered']
    #allocation3 [shape = 's32[1]{0}', space=sflag, size = 0x4, scoped, tag = 'scoped memory for gat_mnist_forward.13']
    %11 = vsyncpa [#allocation3], 0
    // Predicated region
    $region2: #{gat_mnist_forward.13} parent=1 // pred_check
      _
    $region3: #{gat_mnist_forward.13} parent=1 // pred_check_branch
      %13 = sbr.rel (0) target = $region5
    $region4: #{gat_mnist_forward.13} parent=1 // pred_region
      _
    $region5: #{gat_mnist_forward.13} parent=1 // pred_fallthru
      _
    // Predicated region
    $region6: #{gat_mnist_forward.13} parent=1 // pred_check
      _
    $region7: #{gat_mnist_forward.13} parent=1 // pred_check_branch
      %15 = sbr.rel (0) target = $region9
    $region8: #{gat_mnist_forward.13} parent=1 // pred_region
      _
    $region9: #{gat_mnist_forward.13} parent=1 // pred_fallthru
      _
    // Predicated region
    $region10: #{gat_mnist_forward.13} parent=1 // pred_check
      _
    $region11: #{gat_mnist_forward.13} parent=1 // pred_check_branch
      %17 = sbr.rel (0) target = $region13
    $region12: #{gat_mnist_forward.13} parent=1 // pred_region
      _
    $region13: #{gat_mnist_forward.13} parent=1 // pred_fallthru
      _
    // Predicated region
    $region14: #{gat_mnist_forward.13} parent=1 // pred_check
      _
    $region15: #{gat_mnist_forward.13} parent=1 // pred_check_branch
      %19 = sbr.rel (0) target = $region17
    $region16: #{gat_mnist_forward.13} parent=1 // pred_region
      _
    $region17: #{gat_mnist_forward.13} parent=1 // pred_fallthru
      _
    // Predicated region
    $region18: #{gat_mnist_forward.13} parent=1 // pred_check
      _
    $region19: #{gat_mnist_forward.13} parent=1 // pred_check_branch
      %21 = sbr.rel (0) target = $region21
    $region20: #{gat_mnist_forward.13} parent=1 // pred_region
      _
    $region21: #{gat_mnist_forward.13} parent=1 // pred_fallthru
      _
    // Predicated region
    $region22: #{gat_mnist_forward.13} parent=1 // pred_check
      _
    $region23: #{gat_mnist_forward.13} parent=1 // pred_check_branch
      %23 = sbr.rel (0) target = $region25
    $region24: #{gat_mnist_forward.13} parent=1 // pred_region
      _
    $region25: #{gat_mnist_forward.13} parent=1 // pred_fallthru
      _
    %v24 = vld [vmem:[%s0] sm:$0xff]
    %v25 = vld [vmem:[%s0 + $0x8] sm:$0xff]
    %v26 = vld [vmem:[%s1] sm:$0xff]
    %v27 = vld [vmem:[%s1 + $0x8] sm:$0xff]
    %28 = vxpose.xlu0.b32.start [1/16] %v24, 128
    %29 = vxpose.xlu0.b32.cont [2/16] %v25, 128
    %30 = vxpose.xlu0.b32.cont [3/16] 0.0, 128
    %31 = vxpose.xlu0.b32.cont [4/16] 0.0, 128
    %32 = vxpose.xlu0.b32.cont [5/16] 0.0, 128
    %33 = vxpose.xlu0.b32.cont [6/16] 0.0, 128
    %34 = vxpose.xlu0.b32.cont [7/16] 0.0, 128
    %35 = vxpose.xlu0.b32.cont [8/16] 0.0, 128
    %36 = vxpose.xlu0.b32.cont [9/16] 0.0, 128
    %37 = vxpose.xlu0.b32.cont [10/16] 0.0, 128
    %38 = vxpose.xlu0.b32.cont [11/16] 0.0, 128
    %39 = vxpose.xlu0.b32.cont [12/16] 0.0, 128
    %40 = vxpose.xlu0.b32.cont [13/16] 0.0, 128
    %41 = vxpose.xlu0.b32.cont [14/16] 0.0, 128
    %42 = vxpose.xlu0.b32.cont [15/16] 0.0, 128
    %43 = vxpose.xlu0.b32.end [16/16] 0.0, 128
    %v44 = vpop.trf.xlu0
    %v45 = vpop.trf.xlu0
    %v46 = vpop.trf.xlu0
    %v47 = vpop.trf.xlu0
    %v48 = vpop.trf.xlu0
    %v49 = vpop.trf.xlu0
    %v50 = vpop.trf.xlu0
    %v51 = vpop.trf.xlu0
    %v52 = vpop.trf.xlu0
    %v53 = vpop.trf.xlu0
    %v54 = vpop.trf.xlu0
    %v55 = vpop.trf.xlu0
    %v56 = vpop.trf.xlu0
    %v57 = vpop.trf.xlu0
    %v58 = vpop.trf.xlu0
    %v59 = vpop.trf.xlu0
    %vm60 = vcmask 130048
    %v62 = vsel %vm60, %v44, 0
    %64 = vmatprep.subr.mxu0 0.0
    %65 = vmatpush1.msra.mxu0 0.0
    %66 = vmatprep.subr.mxu0 0.0
    %67 = vmatpush1.msra.mxu0 0.0
    %68 = vmatprep.subr.mxu0 0.0
    %69 = vmatpush1.msra.mxu0 0.0
    %70 = vmatprep.subr.mxu0 0.0
    %71 = vmatpush1.msra.mxu0 0.0
    %72 = vmatprep.subr.mxu0 0.0
    %73 = vmatpush1.msra.mxu0 0.0
    %74 = vmatprep.subr.mxu0 0.0
    %75 = vmatpush1.msra.mxu0 0.0
    %76 = vmatprep.subr.mxu0 0.0
    %77 = vmatpush1.msra.mxu0 0.0
    %78 = vmatprep.subr.mxu0 0.0
    %79 = vmatpush1.msra.mxu0 0.0
    %80 = vmatprep.subr.mxu0 0.0
    %81 = vmatpush1.msra.mxu0 0.0
    %82 = vmatprep.subr.mxu0 0.0
    %83 = vmatpush1.msra.mxu0 0.0
    %84 = vmatprep.subr.mxu0 0.0
    %85 = vmatpush1.msra.mxu0 0.0
    %86 = vmatprep.subr.mxu0 0.0
    %87 = vmatpush1.msra.mxu0 0.0
    %88 = vmatprep.subr.mxu0 0.0
    %89 = vmatpush1.msra.mxu0 0.0
    %90 = vmatprep.subr.mxu0 0.0
    %91 = vmatpush1.msra.mxu0 0.0
    %92 = vmatprep.subr.mxu0 0.0
    %93 = vmatpush1.msra.mxu0 %v27
    %94 = vmatprep.subr.mxu0 0.0
    %95 = vmatpush1.msra.mxu0 %v26
    %96 = vmatprep.subr.mxu0 0.0
    %97 = vmatpush2.msra.mxu0 0.0
    %98 = vmatprep.subr.mxu0 0.0
    %99 = vmatpush2.msra.mxu0 0.0
    %100 = vmatprep.subr.mxu0 0.0
    %101 = vmatpush2.msra.mxu0 0.0
    %102 = vmatprep.subr.mxu0 0.0
    %103 = vmatpush2.msra.mxu0 0.0
    %104 = vmatprep.subr.mxu0 0.0
    %105 = vmatpush2.msra.mxu0 0.0
    %106 = vmatprep.subr.mxu0 0.0
    %107 = vmatpush2.msra.mxu0 0.0
    %108 = vmatprep.subr.mxu0 0.0
    %109 = vmatpush2.msra.mxu0 0.0
    %110 = vmatprep.subr.mxu0 0.0
    %111 = vmatpush2.msra.mxu0 0.0
    %112 = vmatprep.subr.mxu0 0.0
    %113 = vmatpush2.msra.mxu0 0.0
    %114 = vmatprep.subr.mxu0 0.0
    %115 = vmatpush2.msra.mxu0 0.0
    %116 = vmatprep.subr.mxu0 0.0
    %117 = vmatpush2.msra.mxu0 0.0
    %118 = vmatprep.subr.mxu0 0.0
    %119 = vmatpush2.msra.mxu0 0.0
    %120 = vmatprep.subr.mxu0 0.0
    %121 = vmatpush2.msra.mxu0 0.0
    %122 = vmatprep.subr.mxu0 0.0
    %123 = vmatpush2.msra.mxu0 0.0
    %124 = vmatprep.subr.mxu0 0.0
    %125 = vmatpush2.msra.mxu0 0.0
    %126 = vmatprep.subr.mxu0 0.0
    %127 = vmatpush2.msra.mxu0 0.0
    %128 = vmatprep.mubr.f32.mxu0 0.0
    %129 = vmatmul.mubr.f32.gmra.mxu0 %v62
    %v130 = vpop.f32.mrf.mxu0
    %v131 = vadd.f32 0.0, %v130
    %v132 = vpop.f32.mrf.mxu0
    %133 = vdwg.mxu0
    %v134 = vld [vmem:[%s2] sm:$0xff]
    %v135 = vld [vmem:[%s2 + $0x8] sm:$0xff]
    %v136 = vld [vmem:[%s2 + $0x10] sm:$0xff]
    %v137 = vld [vmem:[%s2 + $0x18] sm:$0xff]
    %v138 = vld [vmem:[%s2 + $0x20] sm:$0xff]
    %v139 = vld [vmem:[%s2 + $0x28] sm:$0xff]
    %v140 = vld [vmem:[%s2 + $0x30] sm:$0xff]
    %v141 = vld [vmem:[%s2 + $0x38] sm:$0xff]
    %v142 = vld [vmem:[%s3] sm:$0x1]
    %v144 = vlaneseq
    %v145 = vshrl.u32 %v144, 7
    %v146 = vsub.s32 0, %v145
    %v147 = vrot.slane %v142, %v146
    %vm149 = vcmask 523264
    %v151 = vsel %vm149, %v131, 0
    %153 = vmatprep.subr.mxu0 0.0
    %154 = vmatpush1.msra.mxu0 0.0
    %155 = vmatprep.subr.mxu0 0.0
    %156 = vmatpush1.msra.mxu0 0.0
    %157 = vmatprep.subr.mxu0 0.0
    %158 = vmatpush1.msra.mxu0 0.0
    %159 = vmatprep.subr.mxu0 0.0
    %160 = vmatpush1.msra.mxu0 0.0
    %161 = vmatprep.subr.mxu0 0.0
    %162 = vmatpush1.msra.mxu0 0.0
    %163 = vmatprep.subr.mxu0 0.0
    %164 = vmatpush1.msra.mxu0 0.0
    %165 = vmatprep.subr.mxu0 0.0
    %166 = vmatpush1.msra.mxu0 0.0
    %167 = vmatprep.subr.mxu0 0.0
    %168 = vmatpush1.msra.mxu0 0.0
    %169 = vmatprep.subr.mxu0 0.0
    %170 = vmatpush1.msra.mxu0 %v141
    %171 = vmatprep.subr.mxu0 0.0
    %172 = vmatpush1.msra.mxu0 %v140
    %173 = vmatprep.subr.mxu0 0.0
    %174 = vmatpush1.msra.mxu0 %v139
    %175 = vmatprep.subr.mxu0 0.0
    %176 = vmatpush1.msra.mxu0 %v138
    %177 = vmatprep.subr.mxu0 0.0
    %178 = vmatpush1.msra.mxu0 %v137
    %179 = vmatprep.subr.mxu0 0.0
    %180 = vmatpush1.msra.mxu0 %v136
    %181 = vmatprep.subr.mxu0 0.0
    %182 = vmatpush1.msra.mxu0 %v135
    %183 = vmatprep.subr.mxu0 0.0
    %184 = vmatpush1.msra.mxu0 %v134
    %185 = vmatprep.subr.mxu0 0.0
    %186 = vmatpush2.msra.mxu0 0.0
    %187 = vmatprep.subr.mxu0 0.0
    %188 = vmatpush2.msra.mxu0 0.0
    %189 = vmatprep.subr.mxu0 0.0
    %190 = vmatpush2.msra.mxu0 0.0
    %191 = vmatprep.subr.mxu0 0.0
    %192 = vmatpush2.msra.mxu0 0.0
    %193 = vmatprep.subr.mxu0 0.0
    %194 = vmatpush2.msra.mxu0 0.0
    %195 = vmatprep.subr.mxu0 0.0
    %196 = vmatpush2.msra.mxu0 0.0
    %197 = vmatprep.subr.mxu0 0.0
    %198 = vmatpush2.msra.mxu0 0.0
    %199 = vmatprep.subr.mxu0 0.0
    %200 = vmatpush2.msra.mxu0 0.0
    %201 = vmatprep.subr.mxu0 0.0
    %202 = vmatpush2.msra.mxu0 0.0
    %203 = vmatprep.subr.mxu0 0.0
    %204 = vmatpush2.msra.mxu0 0.0
    %205 = vmatprep.subr.mxu0 0.0
    %206 = vmatpush2.msra.mxu0 0.0
    %207 = vmatprep.subr.mxu0 0.0
    %208 = vmatpush2.msra.mxu0 0.0
    %209 = vmatprep.subr.mxu0 0.0
    %210 = vmatpush2.msra.mxu0 0.0
    %211 = vmatprep.subr.mxu0 0.0
    %212 = vmatpush2.msra.mxu0 0.0
    %213 = vmatprep.subr.mxu0 0.0
    %214 = vmatpush2.msra.mxu0 0.0
    %215 = vmatprep.subr.mxu0 0.0
    %216 = vmatpush2.msra.mxu0 0.0
    %217 = vmatprep.mubr.f32.mxu0 0.0
    %218 = vmatmul.mubr.f32.gmra.mxu0 %v151
    %v219 = vpop.f32.mrf.mxu0
    %v220 = vadd.f32 %v147, %v219
    %v221 = vpop.f32.mrf.mxu0
    %222 = vdwg.mxu0
    %v223 = vmax.f32 %v220, 0.0
    %v224 = vld [vmem:[%s4] sm:$0xff]
    %v225 = vld [vmem:[%s4 + $0x8] sm:$0xff]
    %v226 = vld [vmem:[%s4 + $0x10] sm:$0xff]
    %v227 = vld [vmem:[%s4 + $0x18] sm:$0xff]
    %v228 = vld [vmem:[%s5] sm:$0x1]
    %v230 = vlaneseq
    %v231 = vshrl.u32 %v230, 7
    %v232 = vsub.s32 0, %v231
    %v233 = vrot.slane %v228, %v232
    %vm235 = vcmask 261120
    %v237 = vsel %vm235, %v223, 0
    %239 = vmatprep.subr.mxu0 0.0
    %240 = vmatpush1.msra.mxu0 0.0
    %241 = vmatprep.subr.mxu0 0.0
    %242 = vmatpush1.msra.mxu0 0.0
    %243 = vmatprep.subr.mxu0 0.0
    %244 = vmatpush1.msra.mxu0 0.0
    %245 = vmatprep.subr.mxu0 0.0
    %246 = vmatpush1.msra.mxu0 0.0
    %247 = vmatprep.subr.mxu0 0.0
    %248 = vmatpush1.msra.mxu0 0.0
    %249 = vmatprep.subr.mxu0 0.0
    %250 = vmatpush1.msra.mxu0 0.0
    %251 = vmatprep.subr.mxu0 0.0
    %252 = vmatpush1.msra.mxu0 0.0
    %253 = vmatprep.subr.mxu0 0.0
    %254 = vmatpush1.msra.mxu0 0.0
    %255 = vmatprep.subr.mxu0 0.0
    %256 = vmatpush1.msra.mxu0 0.0
    %257 = vmatprep.subr.mxu0 0.0
    %258 = vmatpush1.msra.mxu0 0.0
    %259 = vmatprep.subr.mxu0 0.0
    %260 = vmatpush1.msra.mxu0 0.0
    %261 = vmatprep.subr.mxu0 0.0
    %262 = vmatpush1.msra.mxu0 0.0
    %263 = vmatprep.subr.mxu0 0.0
    %264 = vmatpush1.msra.mxu0 %v227
    %265 = vmatprep.subr.mxu0 0.0
    %266 = vmatpush1.msra.mxu0 %v226
    %267 = vmatprep.subr.mxu0 0.0
    %268 = vmatpush1.msra.mxu0 %v225
    %269 = vmatprep.subr.mxu0 0.0
    %270 = vmatpush1.msra.mxu0 %v224
    %271 = vmatprep.subr.mxu0 0.0
    %272 = vmatpush2.msra.mxu0 0.0
    %273 = vmatprep.subr.mxu0 0.0
    %274 = vmatpush2.msra.mxu0 0.0
    %275 = vmatprep.subr.mxu0 0.0
    %276 = vmatpush2.msra.mxu0 0.0
    %277 = vmatprep.subr.mxu0 0.0
    %278 = vmatpush2.msra.mxu0 0.0
    %279 = vmatprep.subr.mxu0 0.0
    %280 = vmatpush2.msra.mxu0 0.0
    %281 = vmatprep.subr.mxu0 0.0
    %282 = vmatpush2.msra.mxu0 0.0
    %283 = vmatprep.subr.mxu0 0.0
    %284 = vmatpush2.msra.mxu0 0.0
    %285 = vmatprep.subr.mxu0 0.0
    %286 = vmatpush2.msra.mxu0 0.0
    %287 = vmatprep.subr.mxu0 0.0
    %288 = vmatpush2.msra.mxu0 0.0
    %289 = vmatprep.subr.mxu0 0.0
    %290 = vmatpush2.msra.mxu0 0.0
    %291 = vmatprep.subr.mxu0 0.0
    %292 = vmatpush2.msra.mxu0 0.0
    %293 = vmatprep.subr.mxu0 0.0
    %294 = vmatpush2.msra.mxu0 0.0
    %295 = vmatprep.subr.mxu0 0.0
    %296 = vmatpush2.msra.mxu0 0.0
    %297 = vmatprep.subr.mxu0 0.0
    %298 = vmatpush2.msra.mxu0 0.0
    %299 = vmatprep.subr.mxu0 0.0
    %300 = vmatpush2.msra.mxu0 0.0
    %301 = vmatprep.subr.mxu0 0.0
    %302 = vmatpush2.msra.mxu0 0.0
    %303 = vmatprep.mubr.f32.mxu0 0.0
    %304 = vmatmul.mubr.f32.gmra.mxu0 %v237
    %v305 = vpop.f32.mrf.mxu0
    %v306 = vadd.f32 %v233, %v305
    %v307 = vpop.f32.mrf.mxu0
    %308 = vdwg.mxu0
    %vm309 = vcmask 74752
    %310 = vst.msk [vmem:[#allocation2] sm:$0x3] %vm309, %v306
    // Predicated region
    $region26: #{gat_mnist_forward.13} parent=1 // pred_check
      _
    $region27: #{gat_mnist_forward.13} parent=1 // pred_check_branch
      %312 = sbr.rel (0) target = $region29
    $region28: #{gat_mnist_forward.13} parent=1 // pred_region
      %s314 = ssub.s32 32, 32
      %315 = vsyncadd [#allocation3], %s314
      %s317 = sshll.u32 [#allocation2], 4
      %s318 = int_to_ptr.vmem [resolvable:$true] %s317
      %320 = dma.vmem_to_hbm [thread:$0]  %s318, 32, %s6, [#allocation3]
    $region29: #{gat_mnist_forward.13} parent=1 // pred_fallthru
      _
    // Predicated region
    $region30: #{gat_mnist_forward.13} parent=1 // pred_check
      _
    $region31: #{gat_mnist_forward.13} parent=1 // pred_check_branch
      %322 = sbr.rel (0) target = $region33
    $region32: #{gat_mnist_forward.13} parent=1 // pred_region
      %323 = dma.done [#allocation3], 32
    $region33: #{gat_mnist_forward.13} parent=1 // pred_fallthru
      _
    %324 = vsyncpa [#allocation3], 1

</llo_original>
